<compile_context>
chip_gen: v7x
topology: tpu7x:2x2x1
jax: 0.10.0
libtpu: 0.0.40
codegen_flags: <defaults>
</compile_context>

<pallas_src>
import jax
import jax.numpy as jnp
from jax.experimental import pallas as pl
from jax.experimental.pallas import tpu as pltpu

LANE = 128


def _round_up(n, m):
    return (n + m - 1) // m * m


def mlp_kernel(x_ref,
               w1_ref, b1_ref,
               w2_ref, b2_ref,
               w3_ref, b3_ref,
               w4_ref, b4_ref,
               o_ref):
    """Whole-network fused forward for one batch tile (all weights resident in VMEM)."""
    # fc1 + relu   (bf16 matmul, f32 accumulate / bias / relu)
    h = jnp.dot(x_ref[...], w1_ref[...], preferred_element_type=jnp.float32) + b1_ref[...]
    h = jnp.maximum(h, 0.0).astype(jnp.bfloat16)
    # dropout1: identity (eval mode)
    # fc2 + relu
    h = jnp.dot(h, w2_ref[...], preferred_element_type=jnp.float32) + b2_ref[...]
    h = jnp.maximum(h, 0.0).astype(jnp.bfloat16)
    # dropout2: identity (eval mode)
    # fc3 + relu  (output padded to 128 lanes; padded columns are exactly zero)
    h = jnp.dot(h, w3_ref[...], preferred_element_type=jnp.float32) + b3_ref[...]
    h = jnp.maximum(h, 0.0).astype(jnp.bfloat16)
    # fc4 (output padded to 128 lanes -> lane-dense store)
    out = jnp.dot(h, w4_ref[...], preferred_element_type=jnp.float32) + b4_ref[...]
    o_ref[...] = out.astype(o_ref.dtype)


def _pad_cols(a, m):
    pad = _round_up(a.shape[1], m) - a.shape[1]
    return a if pad == 0 else jnp.pad(a, ((0, 0), (0, pad)))


def _pad_rows(a, m):
    pad = _round_up(a.shape[0], m) - a.shape[0]
    return a if pad == 0 else jnp.pad(a, ((0, pad), (0, 0)))


def prepare_params(p):
    """Cast weights to bf16 (f32 biases) and pad the narrow tail (64/2 wide) to 128 lanes."""
    w3 = _pad_cols(p["w3"], LANE)                    # (256, 64) -> (256, 128)
    b3 = _pad_cols(p["b3"], LANE)                    # (1, 64)   -> (1, 128)
    w4 = _pad_rows(_pad_cols(p["w4"], LANE), LANE)   # (64, 2)   -> (128, 128)
    b4 = _pad_cols(p["b4"], LANE)                    # (1, 2)    -> (1, 128)
    return {
        "w1": p["w1"].astype(jnp.bfloat16), "b1": p["b1"].astype(jnp.float32),
        "w2": p["w2"].astype(jnp.bfloat16), "b2": p["b2"].astype(jnp.float32),
        "w3": w3.astype(jnp.bfloat16),      "b3": b3.astype(jnp.float32),
        "w4": w4.astype(jnp.bfloat16),      "b4": b4.astype(jnp.float32),
    }


def mlp_forward(x, params, *, batch_tile=512):
    """x: (B, input_dim) float32. params: dict of (in, out) weights and (1, N) biases."""
    B, in_dim = x.shape
    out_dim = params["w4"].shape[1]

    kp = prepare_params(params)
    out_pad = kp["w4"].shape[1]            # 128 after lane padding

    # Batch tile: as large as requested but no larger than the (row-padded) batch;
    # always a multiple of 8 so the (8, 128) block constraint holds.
    tile = _round_up(min(batch_tile, _round_up(B, 8)), 8)
    B_pad = _round_up(B, tile)

    x_bf16 = x.astype(jnp.bfloat16)
    if B_pad != B:
        x_bf16 = jnp.pad(x_bf16, ((0, B_pad - B), (0, 0)))

    grid = (B_pad // tile,)

    # Constant index map -> weights/biases stay resident in VMEM across all grid steps.
    full = lambda a: pl.BlockSpec(a.shape, lambda i: (0, 0))

    out = pl.pallas_call(
        mlp_kernel,
        out_shape=jax.ShapeDtypeStruct((B_pad, out_pad), jnp.float32),
        grid_spec=pltpu.PrefetchScalarGridSpec(
            num_scalar_prefetch=0,
            grid=grid,
            in_specs=[
                pl.BlockSpec((tile, in_dim), lambda i: (i, 0)),   # x tile (bf16)
                full(kp["w1"]), full(kp["b1"]),
                full(kp["w2"]), full(kp["b2"]),
                full(kp["w3"]), full(kp["b3"]),
                full(kp["w4"]), full(kp["b4"]),
            ],
            out_specs=pl.BlockSpec((tile, out_pad), lambda i: (i, 0)),
        ),
        compiler_params=pltpu.CompilerParams(
            dimension_semantics=("parallel",),   # megacore-shard batch axis (v7x: 2 TCs)
            vmem_limit_bytes=48 << 20,           # safe on v5e/v6e (128 MiB) and v7x (64 MiB)
        ),
    )(x_bf16,
      kp["w1"], kp["b1"], kp["w2"], kp["b2"],
      kp["w3"], kp["b3"], kp["w4"], kp["b4"])

    return out[:B, :out_dim]


def _kaiming_uniform_relu(key, out_features, in_features):
    # PyTorch kaiming_uniform_(nonlinearity='relu'): gain=sqrt(2), fan_in mode.
    gain = jnp.sqrt(2.0)
    bound = gain * jnp.sqrt(3.0 / in_features)
    w = jax.random.uniform(key, (out_features, in_features),
                           minval=-bound, maxval=bound, dtype=jnp.float32)
    return w.T  # store transposed: (in, out)


def _xavier_uniform(key, out_features, in_features):
    bound = jnp.sqrt(6.0 / (in_features + out_features))
    w = jax.random.uniform(key, (out_features, in_features),
                           minval=-bound, maxval=bound, dtype=jnp.float32)
    return w.T


def init_mlp_params(key, input_dim=512, output_dim=2):
    k1, k2, k3, k4 = jax.random.split(key, 4)
    return {
        "w1": _kaiming_uniform_relu(k1, 512, input_dim), "b1": jnp.zeros((1, 512), jnp.float32),
        "w2": _kaiming_uniform_relu(k2, 256, 512),       "b2": jnp.zeros((1, 256), jnp.float32),
        "w3": _kaiming_uniform_relu(k3, 64, 256),        "b3": jnp.zeros((1, 64), jnp.float32),
        "w4": _xavier_uniform(k4, output_dim, 64),       "b4": jnp.zeros((1, output_dim), jnp.float32),
    }


if __name__ == "__main__":
    key = jax.random.PRNGKey(0)
    key_x, key_p = jax.random.split(key)

    input_dim, output_dim, batch = 512, 2, 16
    x = jax.random.normal(key_x, (batch, input_dim), dtype=jnp.float32)
    params = init_mlp_params(key_p, input_dim=input_dim, output_dim=output_dim)

    out = mlp_forward(x, params)
    out = jax.block_until_ready(out)

    # Pure-JAX reference with the same dtype flow (bf16 matmul inputs, f32 accumulate).
    def ref(xx, p):
        def layer(h, w, b, relu=True):
            y = jnp.dot(h.astype(jnp.bfloat16), w.astype(jnp.bfloat16),
                        preferred_element_type=jnp.float32) + b
            return jnp.maximum(y, 0.0) if relu else y
        h = layer(xx, p["w1"], p["b1"])
        h = layer(h, p["w2"], p["b2"])
        h = layer(h, p["w3"], p["b3"])
        return layer(h, p["w4"], p["b4"], relu=False)

    expected = ref(x, params)
    assert out.shape == (batch, output_dim)
    assert jnp.allclose(out, expected, atol=2e-2, rtol=2e-2), \
        f"max abs err {jnp.max(jnp.abs(out - expected))}"

    print("KERNEL_OK")
</pallas_src>

<mosaic_0001>
module attributes {stable_mosaic.version = 11 : i64} {
  func.func @mlp_kernel(%arg0: i32, %arg1: memref<16x512xbf16, #tpu.memory_space<vmem>>, %arg2: memref<512x512xbf16, #tpu.memory_space<vmem>>, %arg3: memref<1x512xf32, #tpu.memory_space<vmem>>, %arg4: memref<512x256xbf16, #tpu.memory_space<vmem>>, %arg5: memref<1x256xf32, #tpu.memory_space<vmem>>, %arg6: memref<256x128xbf16, #tpu.memory_space<vmem>>, %arg7: memref<1x128xf32, #tpu.memory_space<vmem>>, %arg8: memref<128x128xbf16, #tpu.memory_space<vmem>>, %arg9: memref<1x128xf32, #tpu.memory_space<vmem>>, %arg10: memref<16x128xf32, #tpu.memory_space<vmem>>) attributes {dimension_semantics = [#tpu.dimension_semantics<parallel>], iteration_bounds = array<i64: 1>, scalar_prefetch = 0 : i64, scratch_operands = 0 : i64, tpu.core_type = #tpu.core_type<tc>, window_params = [{transform_indices = @transform_0, window_bounds = array<i64: 16, 512>}, {pipeline_mode = #tpu.pipeline_mode<synchronous>, transform_indices = @transform_1, window_bounds = array<i64: 512, 512>}, {pipeline_mode = #tpu.pipeline_mode<synchronous>, transform_indices = @transform_2, window_bounds = array<i64: 1, 512>}, {pipeline_mode = #tpu.pipeline_mode<synchronous>, transform_indices = @transform_3, window_bounds = array<i64: 512, 256>}, {pipeline_mode = #tpu.pipeline_mode<synchronous>, transform_indices = @transform_4, window_bounds = array<i64: 1, 256>}, {pipeline_mode = #tpu.pipeline_mode<synchronous>, transform_indices = @transform_5, window_bounds = array<i64: 256, 128>}, {pipeline_mode = #tpu.pipeline_mode<synchronous>, transform_indices = @transform_6, window_bounds = array<i64: 1, 128>}, {pipeline_mode = #tpu.pipeline_mode<synchronous>, transform_indices = @transform_7, window_bounds = array<i64: 128, 128>}, {pipeline_mode = #tpu.pipeline_mode<synchronous>, transform_indices = @transform_8, window_bounds = array<i64: 1, 128>}, {transform_indices = @transform_9, window_bounds = array<i64: 16, 128>}]} {
    %c0 = arith.constant 0 : index
    %c0_0 = arith.constant 0 : index
    %0 = vector.load %arg1[%c0, %c0_0] : memref<16x512xbf16, #tpu.memory_space<vmem>>, vector<16x512xbf16>
    %c0_1 = arith.constant 0 : index
    %c0_2 = arith.constant 0 : index
    %1 = vector.load %arg2[%c0_1, %c0_2] : memref<512x512xbf16, #tpu.memory_space<vmem>>, vector<512x512xbf16>
    %cst = arith.constant dense<0.000000e+00> : vector<16x512xf32>
    %2 = tpu.matmul %0, %1, %cst {dimension_numbers = #tpu.dot_dimension_numbers<[1], [0], [0], [1], [0, 0, 1, 1], [], []>} : vector<16x512xbf16>, vector<512x512xbf16>, vector<16x512xf32> -> vector<16x512xf32>
    %c0_3 = arith.constant 0 : index
    %c0_4 = arith.constant 0 : index
    %3 = vector.load %arg3[%c0_3, %c0_4] : memref<1x512xf32, #tpu.memory_space<vmem>>, vector<1x512xf32>
    %4 = vector.broadcast %3 : vector<1x512xf32> to vector<16x512xf32>
    %5 = arith.addf %2, %4 : vector<16x512xf32>
    %cst_5 = arith.constant 0.000000e+00 : f32
    %6 = vector.broadcast %cst_5 : f32 to vector<16x512xf32>
    %7 = arith.maximumf %5, %6 : vector<16x512xf32>
    %8 = arith.truncf %7 : vector<16x512xf32> to vector<16x512xbf16>
    %c0_6 = arith.constant 0 : index
    %c0_7 = arith.constant 0 : index
    %9 = vector.load %arg4[%c0_6, %c0_7] : memref<512x256xbf16, #tpu.memory_space<vmem>>, vector<512x256xbf16>
    %cst_8 = arith.constant dense<0.000000e+00> : vector<16x256xf32>
    %10 = tpu.matmul %8, %9, %cst_8 {dimension_numbers = #tpu.dot_dimension_numbers<[1], [0], [0], [1], [0, 0, 1, 1], [], []>} : vector<16x512xbf16>, vector<512x256xbf16>, vector<16x256xf32> -> vector<16x256xf32>
    %c0_9 = arith.constant 0 : index
    %c0_10 = arith.constant 0 : index
    %11 = vector.load %arg5[%c0_9, %c0_10] : memref<1x256xf32, #tpu.memory_space<vmem>>, vector<1x256xf32>
    %12 = vector.broadcast %11 : vector<1x256xf32> to vector<16x256xf32>
    %13 = arith.addf %10, %12 : vector<16x256xf32>
    %cst_11 = arith.constant 0.000000e+00 : f32
    %14 = vector.broadcast %cst_11 : f32 to vector<16x256xf32>
    %15 = arith.maximumf %13, %14 : vector<16x256xf32>
    %16 = arith.truncf %15 : vector<16x256xf32> to vector<16x256xbf16>
    %c0_12 = arith.constant 0 : index
    %c0_13 = arith.constant 0 : index
    %17 = vector.load %arg6[%c0_12, %c0_13] : memref<256x128xbf16, #tpu.memory_space<vmem>>, vector<256x128xbf16>
    %cst_14 = arith.constant dense<0.000000e+00> : vector<16x128xf32>
    %18 = tpu.matmul %16, %17, %cst_14 {dimension_numbers = #tpu.dot_dimension_numbers<[1], [0], [0], [1], [0, 0, 1, 1], [], []>} : vector<16x256xbf16>, vector<256x128xbf16>, vector<16x128xf32> -> vector<16x128xf32>
    %c0_15 = arith.constant 0 : index
    %c0_16 = arith.constant 0 : index
    %19 = vector.load %arg7[%c0_15, %c0_16] : memref<1x128xf32, #tpu.memory_space<vmem>>, vector<1x128xf32>
    %20 = vector.broadcast %19 : vector<1x128xf32> to vector<16x128xf32>
    %21 = arith.addf %18, %20 : vector<16x128xf32>
    %cst_17 = arith.constant 0.000000e+00 : f32
    %22 = vector.broadcast %cst_17 : f32 to vector<16x128xf32>
    %23 = arith.maximumf %21, %22 : vector<16x128xf32>
    %24 = arith.truncf %23 : vector<16x128xf32> to vector<16x128xbf16>
    %c0_18 = arith.constant 0 : index
    %c0_19 = arith.constant 0 : index
    %25 = vector.load %arg8[%c0_18, %c0_19] : memref<128x128xbf16, #tpu.memory_space<vmem>>, vector<128x128xbf16>
    %cst_20 = arith.constant dense<0.000000e+00> : vector<16x128xf32>
    %26 = tpu.matmul %24, %25, %cst_20 {dimension_numbers = #tpu.dot_dimension_numbers<[1], [0], [0], [1], [0, 0, 1, 1], [], []>} : vector<16x128xbf16>, vector<128x128xbf16>, vector<16x128xf32> -> vector<16x128xf32>
    %c0_21 = arith.constant 0 : index
    %c0_22 = arith.constant 0 : index
    %27 = vector.load %arg9[%c0_21, %c0_22] : memref<1x128xf32, #tpu.memory_space<vmem>>, vector<1x128xf32>
    %28 = vector.broadcast %27 : vector<1x128xf32> to vector<16x128xf32>
    %29 = arith.addf %26, %28 : vector<16x128xf32>
    %c0_23 = arith.constant 0 : index
    %c0_24 = arith.constant 0 : index
    %30 = vector.load %arg10[%c0_23, %c0_24] : memref<16x128xf32, #tpu.memory_space<vmem>>, vector<16x128xf32>
    tpu.vector_store %arg10[%c0_23, %c0_24], %29 {strides = array<i32>} : memref<16x128xf32, #tpu.memory_space<vmem>>, vector<16x128xf32>,
    return
  }
  func.func @transform_0(%arg0: i32) -> (i32, i32) {
    %c0_i32 = arith.constant 0 : i32
    %c0_i32_0 = arith.constant 0 : i32
    return %arg0, %c0_i32 : i32, i32
  }
  func.func @transform_1(%arg0: i32) -> (i32, i32) {
    %c0_i32 = arith.constant 0 : i32
    %c0_i32_0 = arith.constant 0 : i32
    %c0_i32_1 = arith.constant 0 : i32
    return %c0_i32, %c0_i32_0 : i32, i32
  }
  func.func @transform_2(%arg0: i32) -> (i32, i32) {
    %c0_i32 = arith.constant 0 : i32
    %c0_i32_0 = arith.constant 0 : i32
    %c0_i32_1 = arith.constant 0 : i32
    return %c0_i32, %c0_i32_0 : i32, i32
  }
  func.func @transform_3(%arg0: i32) -> (i32, i32) {
    %c0_i32 = arith.constant 0 : i32
    %c0_i32_0 = arith.constant 0 : i32
    %c0_i32_1 = arith.constant 0 : i32
    return %c0_i32, %c0_i32_0 : i32, i32
  }
  func.func @transform_4(%arg0: i32) -> (i32, i32) {
    %c0_i32 = arith.constant 0 : i32
    %c0_i32_0 = arith.constant 0 : i32
    %c0_i32_1 = arith.constant 0 : i32
    return %c0_i32, %c0_i32_0 : i32, i32
  }
  func.func @transform_5(%arg0: i32) -> (i32, i32) {
    %c0_i32 = arith.constant 0 : i32
    %c0_i32_0 = arith.constant 0 : i32
    %c0_i32_1 = arith.constant 0 : i32
    return %c0_i32, %c0_i32_0 : i32, i32
  }
  func.func @transform_6(%arg0: i32) -> (i32, i32) {
    %c0_i32 = arith.constant 0 : i32
    %c0_i32_0 = arith.constant 0 : i32
    %c0_i32_1 = arith.constant 0 : i32
    return %c0_i32, %c0_i32_0 : i32, i32
  }
  func.func @transform_7(%arg0: i32) -> (i32, i32) {
    %c0_i32 = arith.constant 0 : i32
    %c0_i32_0 = arith.constant 0 : i32
    %c0_i32_1 = arith.constant 0 : i32
    return %c0_i32, %c0_i32_0 : i32, i32
  }
  func.func @transform_8(%arg0: i32) -> (i32, i32) {
    %c0_i32 = arith.constant 0 : i32
    %c0_i32_0 = arith.constant 0 : i32
    %c0_i32_1 = arith.constant 0 : i32
    return %c0_i32, %c0_i32_0 : i32, i32
  }
  func.func @transform_9(%arg0: i32) -> (i32, i32) {
    %c0_i32 = arith.constant 0 : i32
    %c0_i32_0 = arith.constant 0 : i32
    return %arg0, %c0_i32 : i32, i32
  }
}

</mosaic_0001>

<llo_original>
// kernel: tpu_custom_call.1
$region0: #{tpu_custom_call.1}
  #allocation0 [shape = 'u32[]', space=smem, size = 0x4, offset = 0x4, fixed_abs, tag = 'smem constant byte address 0x4 - core index']
  #allocation1 [shape = 'u32[144,128]{1,0:T(1,128)}', space=vmem, size = 0x12000, scoped, tag = 'internal scratch']
  %s0 = inlined_call_operand.hbm [shape: bf16[16,512], index: 0, kind: input, shape index: {}]
  %s1 = inlined_call_operand.hbm [shape: bf16[512,512], index: 1, kind: input, shape index: {}]
  %s2 = inlined_call_operand.vmem [shape: f32[1,512], index: 2, kind: input, shape index: {}]
  %s3 = inlined_call_operand.hbm [shape: bf16[512,256], index: 3, kind: input, shape index: {}]
  %s4 = inlined_call_operand.vmem [shape: f32[1,256], index: 4, kind: input, shape index: {}]
  %s5 = inlined_call_operand.hbm [shape: bf16[256,128], index: 5, kind: input, shape index: {}]
  %s6 = inlined_call_operand.vmem [shape: f32[1,128], index: 6, kind: input, shape index: {}]
  %s7 = inlined_call_operand.hbm [shape: bf16[128,128], index: 7, kind: input, shape index: {}]
  %s8 = inlined_call_operand.vmem [shape: f32[1,128], index: 8, kind: input, shape index: {}]
  %s9 = inlined_call_operand.hbm [shape: f32[16,128], index: 9, kind: output, shape index: {}]
  %s10 = sld [smem:[#allocation0]]
  $region66: #{tpu_custom_call.1} parent=0
    _
  %s12 = ssub.s32 1, %s10
  %s13 = scalar_select 0, %s12, %s10
  $region1: #{tpu_custom_call.1} parent=0
    #allocation2 [shape = 'u8[16384]{0}', space=vmem, size = 0x4000, scoped, tag = 'input window, operand 0, single buffered']
    #allocation3 [shape = 's32[1]{0}', space=sflag, size = 0x4, scoped, tag = 'scoped memory for tpu_custom_call.1']
    #allocation4 [shape = 's32[1]{0}', space=sflag, size = 0x4, scoped, tag = 'scoped memory for tpu_custom_call.1']
    #allocation5 [shape = 'u8[524288]{0}', space=vmem, size = 0x80000, scoped, tag = 'input window, operand 1, single buffered']
    #allocation6 [shape = 's32[1]{0}', space=sflag, size = 0x4, scoped, tag = 'scoped memory for tpu_custom_call.1']
    #allocation7 [shape = 'u8[262144]{0}', space=vmem, size = 0x40000, scoped, tag = 'input window, operand 3, single buffered']
    #allocation8 [shape = 'u8[65536]{0}', space=vmem, size = 0x10000, scoped, tag = 'input window, operand 5, single buffered']
    #allocation9 [shape = 's32[1]{0}', space=sflag, size = 0x4, scoped, tag = 'scoped memory for tpu_custom_call.1']
    #allocation10 [shape = 'u8[32768]{0}', space=vmem, size = 0x8000, scoped, tag = 'input window, operand 7, single buffered']
    #allocation11 [shape = 'u8[8192]{0}', space=vmem, size = 0x2000, scoped, tag = 'output window, operand 0, single buffered']
    %14 = vsyncpa [#allocation3], 0
    %15 = vsyncpa [#allocation6], 0
    %16 = vsyncpa [#allocation9], 0
    %17 = vsyncpa [#allocation4], 0
    // Predicated region
    $region2: #{tpu_custom_call.1} parent=1 // pred_check
      _
    $region3: #{tpu_custom_call.1} parent=1 // pred_check_branch
      %19 = sbr.rel (0) target = $region5
    $region4: #{tpu_custom_call.1} parent=1 // pred_region
      %s21 = ssub.s32 512, 512
      %22 = vsyncadd [#allocation3], %s21
      %s23 = sshll.u32 [#allocation2], 4
      %s24 = int_to_ptr.vmem [resolvable:$true] %s23
      %29 = dma.hbm_to_vmem [thread:$0]  %s0, 512, %s24, [#allocation3], 256, 256, 16
    $region5: #{tpu_custom_call.1} parent=1 // pred_fallthru
      _
    // Predicated region
    $region6: #{tpu_custom_call.1} parent=1 // pred_check
      _
    $region7: #{tpu_custom_call.1} parent=1 // pred_check_branch
      %31 = sbr.rel (0) target = $region9
    $region8: #{tpu_custom_call.1} parent=1 // pred_region
      %s33 = ssub.s32 16384, 16384
      %34 = vsyncadd [#allocation6], %s33
      %s35 = sshll.u32 [#allocation5], 4
      %s36 = int_to_ptr.vmem [resolvable:$true] %s35
      %41 = dma.hbm_to_vmem [thread:$0]  %s1, 16384, %s36, [#allocation6], 256, 256, 16
    $region9: #{tpu_custom_call.1} parent=1 // pred_fallthru
      _
    // Predicated region
    $region10: #{tpu_custom_call.1} parent=1 // pred_check
      _
    $region11: #{tpu_custom_call.1} parent=1 // pred_check_branch
      %43 = sbr.rel (0) target = $region13
    $region12: #{tpu_custom_call.1} parent=1 // pred_region
      _
    $region13: #{tpu_custom_call.1} parent=1 // pred_fallthru
      _
    // Predicated region
    $region14: #{tpu_custom_call.1} parent=1 // pred_check
      _
    $region15: #{tpu_custom_call.1} parent=1 // pred_check_branch
      %45 = sbr.rel (0) target = $region17
    $region16: #{tpu_custom_call.1} parent=1 // pred_region
      %s47 = ssub.s32 8192, 8192
      %48 = vsyncadd [#allocation6], %s47
      %s49 = sshll.u32 [#allocation7], 4
      %s50 = int_to_ptr.vmem [resolvable:$true] %s49
      %55 = dma.hbm_to_vmem [thread:$0]  %s3, 8192, %s50, [#allocation6], 128, 128, 8
    $region17: #{tpu_custom_call.1} parent=1 // pred_fallthru
      _
    // Predicated region
    $region18: #{tpu_custom_call.1} parent=1 // pred_check
      _
    $region19: #{tpu_custom_call.1} parent=1 // pred_check_branch
      %57 = sbr.rel (0) target = $region21
    $region20: #{tpu_custom_call.1} parent=1 // pred_region
      _
    $region21: #{tpu_custom_call.1} parent=1 // pred_fallthru
      _
    // Predicated region
    $region22: #{tpu_custom_call.1} parent=1 // pred_check
      _
    $region23: #{tpu_custom_call.1} parent=1 // pred_check_branch
      %59 = sbr.rel (0) target = $region25
    $region24: #{tpu_custom_call.1} parent=1 // pred_region
      %s61 = ssub.s32 2048, 2048
      %62 = vsyncadd [#allocation9], %s61
      %s63 = sshll.u32 [#allocation8], 4
      %s64 = int_to_ptr.vmem [resolvable:$true] %s63
      %69 = dma.hbm_to_vmem [thread:$0]  %s5, 2048, %s64, [#allocation9], 64, 64, 4
    $region25: #{tpu_custom_call.1} parent=1 // pred_fallthru
      _
    // Predicated region
    $region26: #{tpu_custom_call.1} parent=1 // pred_check
      _
    $region27: #{tpu_custom_call.1} parent=1 // pred_check_branch
      %71 = sbr.rel (0) target = $region29
    $region28: #{tpu_custom_call.1} parent=1 // pred_region
      _
    $region29: #{tpu_custom_call.1} parent=1 // pred_fallthru
      _
    // Predicated region
    $region30: #{tpu_custom_call.1} parent=1 // pred_check
      _
    $region31: #{tpu_custom_call.1} parent=1 // pred_check_branch
      %73 = sbr.rel (0) target = $region33
    $region32: #{tpu_custom_call.1} parent=1 // pred_region
      %s75 = ssub.s32 1024, 1024
      %76 = vsyncadd [#allocation9], %s75
      %s77 = sshll.u32 [#allocation10], 4
      %s78 = int_to_ptr.vmem [resolvable:$true] %s77
      %83 = dma.hbm_to_vmem [thread:$0]  %s7, 1024, %s78, [#allocation9], 64, 64, 4
    $region33: #{tpu_custom_call.1} parent=1 // pred_fallthru
      _
    // Predicated region
    $region34: #{tpu_custom_call.1} parent=1 // pred_check
      _
    $region35: #{tpu_custom_call.1} parent=1 // pred_check_branch
      %85 = sbr.rel (0) target = $region37
    $region36: #{tpu_custom_call.1} parent=1 // pred_region
      _
    $region37: #{tpu_custom_call.1} parent=1 // pred_fallthru
      _
    // Predicated region
    $region38: #{tpu_custom_call.1} parent=1 // pred_check
      _
    $region39: #{tpu_custom_call.1} parent=1 // pred_check_branch
      %87 = sbr.rel (0) target = $region41
    $region40: #{tpu_custom_call.1} parent=1 // pred_region
      %88 = dma.done [#allocation3], 512
    $region41: #{tpu_custom_call.1} parent=1 // pred_fallthru
      _
    // Predicated region
    $region42: #{tpu_custom_call.1} parent=1 // pred_check
      _
    $region43: #{tpu_custom_call.1} parent=1 // pred_check_branch
      %90 = sbr.rel (0) target = $region45
    $region44: #{tpu_custom_call.1} parent=1 // pred_region
      %91 = dma.done [#allocation6], 16384
    $region45: #{tpu_custom_call.1} parent=1 // pred_fallthru
      _
    // Predicated region
    $region46: #{tpu_custom_call.1} parent=1 // pred_check
      _
    $region47: #{tpu_custom_call.1} parent=1 // pred_check_branch
      %93 = sbr.rel (0) target = $region49
    $region48: #{tpu_custom_call.1} parent=1 // pred_region
      %94 = dma.done [#allocation6], 8192
    $region49: #{tpu_custom_call.1} parent=1 // pred_fallthru
      _
    // Predicated region
    $region50: #{tpu_custom_call.1} parent=1 // pred_check
      _
    $region51: #{tpu_custom_call.1} parent=1 // pred_check_branch
      %96 = sbr.rel (0) target = $region53
    $region52: #{tpu_custom_call.1} parent=1 // pred_region
      %97 = dma.done [#allocation9], 2048
    $region53: #{tpu_custom_call.1} parent=1 // pred_fallthru
      _
    // Predicated region
    $region54: #{tpu_custom_call.1} parent=1 // pred_check
      _
    $region55: #{tpu_custom_call.1} parent=1 // pred_check_branch
      %99 = sbr.rel (0) target = $region57
    $region56: #{tpu_custom_call.1} parent=1 // pred_region
      %100 = dma.done [#allocation9], 1024
    $region57: #{tpu_custom_call.1} parent=1 // pred_fallthru
      _
    %v102 = vld [vmem:[#allocation2] sm:$0xff]
    %v103 = vld [vmem:[#allocation2 + $0x8] sm:$0xff]
    %v104 = vld [vmem:[#allocation2 + $0x10] sm:$0xff]
    %v105 = vld [vmem:[#allocation2 + $0x18] sm:$0xff]
    %v106 = vld [vmem:[#allocation5] sm:$0xff]
    %v107 = vld [vmem:[#allocation5 + $0x8] sm:$0xff]
    %v108 = vld [vmem:[#allocation5 + $0x10] sm:$0xff]
    %v109 = vld [vmem:[#allocation5 + $0x18] sm:$0xff]
    %v110 = vld [vmem:[#allocation5 + $0x20] sm:$0xff]
    %v111 = vld [vmem:[#allocation5 + $0x28] sm:$0xff]
    %v112 = vld [vmem:[#allocation5 + $0x30] sm:$0xff]
    %v113 = vld [vmem:[#allocation5 + $0x38] sm:$0xff]
    %v114 = vld [vmem:[#allocation5 + $0x40] sm:$0xff]
    %v115 = vld [vmem:[#allocation5 + $0x48] sm:$0xff]
    %v116 = vld [vmem:[#allocation5 + $0x50] sm:$0xff]
    %v117 = vld [vmem:[#allocation5 + $0x58] sm:$0xff]
    %v118 = vld [vmem:[#allocation5 + $0x60] sm:$0xff]
    %v119 = vld [vmem:[#allocation5 + $0x68] sm:$0xff]
    %v120 = vld [vmem:[#allocation5 + $0x70] sm:$0xff]
    %v121 = vld [vmem:[#allocation5 + $0x78] sm:$0xff]
    %v122 = vld [vmem:[#allocation5 + $0x80] sm:$0xff]
    %v123 = vld [vmem:[#allocation5 + $0x88] sm:$0xff]
    %v124 = vld [vmem:[#allocation5 + $0x90] sm:$0xff]
    %v125 = vld [vmem:[#allocation5 + $0x98] sm:$0xff]
    %v126 = vld [vmem:[#allocation5 + $0xa0] sm:$0xff]
    %v127 = vld [vmem:[#allocation5 + $0xa8] sm:$0xff]
    %v128 = vld [vmem:[#allocation5 + $0xb0] sm:$0xff]
    %v129 = vld [vmem:[#allocation5 + $0xb8] sm:$0xff]
    %v130 = vld [vmem:[#allocation5 + $0xc0] sm:$0xff]
    %v131 = vld [vmem:[#allocation5 + $0xc8] sm:$0xff]
    %v132 = vld [vmem:[#allocation5 + $0xd0] sm:$0xff]
    %v133 = vld [vmem:[#allocation5 + $0xd8] sm:$0xff]
    %v134 = vld [vmem:[#allocation5 + $0xe0] sm:$0xff]
    %v135 = vld [vmem:[#allocation5 + $0xe8] sm:$0xff]
    %v136 = vld [vmem:[#allocation5 + $0xf0] sm:$0xff]
    %v137 = vld [vmem:[#allocation5 + $0xf8] sm:$0xff]
    %v138 = vld [vmem:[#allocation5 + $0x100] sm:$0xff]
    %v139 = vld [vmem:[#allocation5 + $0x108] sm:$0xff]
    %v140 = vld [vmem:[#allocation5 + $0x110] sm:$0xff]
    %v141 = vld [vmem:[#allocation5 + $0x118] sm:$0xff]
    %v142 = vld [vmem:[#allocation5 + $0x120] sm:$0xff]
    %v143 = vld [vmem:[#allocation5 + $0x128] sm:$0xff]
    %v144 = vld [vmem:[#allocation5 + $0x130] sm:$0xff]
    %v145 = vld [vmem:[#allocation5 + $0x138] sm:$0xff]
    %v146 = vld [vmem:[#allocation5 + $0x140] sm:$0xff]
    %v147 = vld [vmem:[#allocation5 + $0x148] sm:$0xff]
    %v148 = vld [vmem:[#allocation5 + $0x150] sm:$0xff]
    %v149 = vld [vmem:[#allocation5 + $0x158] sm:$0xff]
    %v150 = vld [vmem:[#allocation5 + $0x160] sm:$0xff]
    %v151 = vld [vmem:[#allocation5 + $0x168] sm:$0xff]
    %v152 = vld [vmem:[#allocation5 + $0x170] sm:$0xff]
    %v153 = vld [vmem:[#allocation5 + $0x178] sm:$0xff]
    %v154 = vld [vmem:[#allocation5 + $0x180] sm:$0xff]
    %v155 = vld [vmem:[#allocation5 + $0x188] sm:$0xff]
    %v156 = vld [vmem:[#allocation5 + $0x190] sm:$0xff]
    %v157 = vld [vmem:[#allocation5 + $0x198] sm:$0xff]
    %v158 = vld [vmem:[#allocation5 + $0x1a0] sm:$0xff]
    %v159 = vld [vmem:[#allocation5 + $0x1a8] sm:$0xff]
    %v160 = vld [vmem:[#allocation5 + $0x1b0] sm:$0xff]
    %v161 = vld [vmem:[#allocation5 + $0x1b8] sm:$0xff]
    %v162 = vld [vmem:[#allocation5 + $0x1c0] sm:$0xff]
    %v163 = vld [vmem:[#allocation5 + $0x1c8] sm:$0xff]
    %v164 = vld [vmem:[#allocation5 + $0x1d0] sm:$0xff]
    %v165 = vld [vmem:[#allocation5 + $0x1d8] sm:$0xff]
    %v166 = vld [vmem:[#allocation5 + $0x1e0] sm:$0xff]
    %v167 = vld [vmem:[#allocation5 + $0x1e8] sm:$0xff]
    %v168 = vld [vmem:[#allocation5 + $0x1f0] sm:$0xff]
    %v169 = vld [vmem:[#allocation5 + $0x1f8] sm:$0xff]
    %v170 = vld [vmem:[#allocation5 + $0x200] sm:$0xff]
    %v171 = vld [vmem:[#allocation5 + $0x208] sm:$0xff]
    %v172 = vld [vmem:[#allocation5 + $0x210] sm:$0xff]
    %v173 = vld [vmem:[#allocation5 + $0x218] sm:$0xff]
    %v174 = vld [vmem:[#allocation5 + $0x220] sm:$0xff]
    %v175 = vld [vmem:[#allocation5 + $0x228] sm:$0xff]
    %v176 = vld [vmem:[#allocation5 + $0x230] sm:$0xff]
    %v177 = vld [vmem:[#allocation5 + $0x238] sm:$0xff]
    %v178 = vld [vmem:[#allocation5 + $0x240] sm:$0xff]
    %v179 = vld [vmem:[#allocation5 + $0x248] sm:$0xff]
    %v180 = vld [vmem:[#allocation5 + $0x250] sm:$0xff]
    %v181 = vld [vmem:[#allocation5 + $0x258] sm:$0xff]
    %v182 = vld [vmem:[#allocation5 + $0x260] sm:$0xff]
    %v183 = vld [vmem:[#allocation5 + $0x268] sm:$0xff]
    %v184 = vld [vmem:[#allocation5 + $0x270] sm:$0xff]
    %v185 = vld [vmem:[#allocation5 + $0x278] sm:$0xff]
    %v186 = vld [vmem:[#allocation5 + $0x280] sm:$0xff]
    %v187 = vld [vmem:[#allocation5 + $0x288] sm:$0xff]
    %v188 = vld [vmem:[#allocation5 + $0x290] sm:$0xff]
    %v189 = vld [vmem:[#allocation5 + $0x298] sm:$0xff]
    %v190 = vld [vmem:[#allocation5 + $0x2a0] sm:$0xff]
    %v191 = vld [vmem:[#allocation5 + $0x2a8] sm:$0xff]
    %v192 = vld [vmem:[#allocation5 + $0x2b0] sm:$0xff]
    %v193 = vld [vmem:[#allocation5 + $0x2b8] sm:$0xff]
    %v194 = vld [vmem:[#allocation5 + $0x2c0] sm:$0xff]
    %v195 = vld [vmem:[#allocation5 + $0x2c8] sm:$0xff]
    %v196 = vld [vmem:[#allocation5 + $0x2d0] sm:$0xff]
    %v197 = vld [vmem:[#allocation5 + $0x2d8] sm:$0xff]
    %v198 = vld [vmem:[#allocation5 + $0x2e0] sm:$0xff]
    %v199 = vld [vmem:[#allocation5 + $0x2e8] sm:$0xff]
    %v200 = vld [vmem:[#allocation5 + $0x2f0] sm:$0xff]
    %v201 = vld [vmem:[#allocation5 + $0x2f8] sm:$0xff]
    %v202 = vld [vmem:[#allocation5 + $0x300] sm:$0xff]
    %v203 = vld [vmem:[#allocation5 + $0x308] sm:$0xff]
    %v204 = vld [vmem:[#allocation5 + $0x310] sm:$0xff]
    %v205 = vld [vmem:[#allocation5 + $0x318] sm:$0xff]
    %v206 = vld [vmem:[#allocation5 + $0x320] sm:$0xff]
    %v207 = vld [vmem:[#allocation5 + $0x328] sm:$0xff]
    %v208 = vld [vmem:[#allocation5 + $0x330] sm:$0xff]
    %v209 = vld [vmem:[#allocation5 + $0x338] sm:$0xff]
    %v210 = vld [vmem:[#allocation5 + $0x340] sm:$0xff]
    %v211 = vld [vmem:[#allocation5 + $0x348] sm:$0xff]
    %v212 = vld [vmem:[#allocation5 + $0x350] sm:$0xff]
    %v213 = vld [vmem:[#allocation5 + $0x358] sm:$0xff]
    %v214 = vld [vmem:[#allocation5 + $0x360] sm:$0xff]
    %v215 = vld [vmem:[#allocation5 + $0x368] sm:$0xff]
    %v216 = vld [vmem:[#allocation5 + $0x370] sm:$0xff]
    %v217 = vld [vmem:[#allocation5 + $0x378] sm:$0xff]
    %v218 = vld [vmem:[#allocation5 + $0x380] sm:$0xff]
    %v219 = vld [vmem:[#allocation5 + $0x388] sm:$0xff]
    %v220 = vld [vmem:[#allocation5 + $0x390] sm:$0xff]
    %v221 = vld [vmem:[#allocation5 + $0x398] sm:$0xff]
    %v222 = vld [vmem:[#allocation5 + $0x3a0] sm:$0xff]
    %v223 = vld [vmem:[#allocation5 + $0x3a8] sm:$0xff]
    %v224 = vld [vmem:[#allocation5 + $0x3b0] sm:$0xff]
    %v225 = vld [vmem:[#allocation5 + $0x3b8] sm:$0xff]
    %v226 = vld [vmem:[#allocation5 + $0x3c0] sm:$0xff]
    %v227 = vld [vmem:[#allocation5 + $0x3c8] sm:$0xff]
    %v228 = vld [vmem:[#allocation5 + $0x3d0] sm:$0xff]
    %v229 = vld [vmem:[#allocation5 + $0x3d8] sm:$0xff]
    %v230 = vld [vmem:[#allocation5 + $0x3e0] sm:$0xff]
    %v231 = vld [vmem:[#allocation5 + $0x3e8] sm:$0xff]
    %v232 = vld [vmem:[#allocation5 + $0x3f0] sm:$0xff]
    %v233 = vld [vmem:[#allocation5 + $0x3f8] sm:$0xff]
    %v234 = vld [vmem:[%s2] sm:$0xf]
    %v236 = vlaneseq
    %v237 = vshrl.u32 %v236, 7
    %v238 = vsub.s32 0, %v237
    %v239 = vrot.slane %v234, %v238
    %v240 = vlaneseq
    %v241 = vshrl.u32 %v240, 7
    %v242 = vsub.s32 1, %v241
    %v243 = vrot.slane %v234, %v242
    %v244 = vlaneseq
    %v245 = vshrl.u32 %v244, 7
    %v246 = vsub.s32 2, %v245
    %v247 = vrot.slane %v234, %v246
    %v248 = vlaneseq
    %v249 = vshrl.u32 %v248, 7
    %v250 = vsub.s32 3, %v249
    %v251 = vrot.slane %v234, %v250
    %v260 = vunpack.c.l.b16 %v102
    %v261 = vunpack.c.h.b16 %v102
    %v262 = vunpack.c.l.b16 %v103
    %v263 = vunpack.c.h.b16 %v103
    %v264 = vunpack.c.l.b16 %v104
    %v265 = vunpack.c.h.b16 %v104
    %v266 = vunpack.c.l.b16 %v105
    %v267 = vunpack.c.h.b16 %v105
    %v268 = vpack.c.b16 %v264, %v260
    %v269 = vpack.c.b16 %v265, %v261
    %v270 = vpack.c.b16 %v266, %v262
    %v271 = vpack.c.b16 %v267, %v263
    %v404 = vunpack.c.l.b16 %v106
    %v405 = vunpack.c.h.b16 %v106
    %v406 = vunpack.c.l.b16 %v107
    %v407 = vunpack.c.h.b16 %v107
    %v408 = vunpack.c.l.b16 %v108
    %v409 = vunpack.c.h.b16 %v108
    %v410 = vunpack.c.l.b16 %v109
    %v411 = vunpack.c.h.b16 %v109
    %v412 = vunpack.c.l.b16 %v110
    %v413 = vunpack.c.h.b16 %v110
    %v414 = vunpack.c.l.b16 %v111
    %v415 = vunpack.c.h.b16 %v111
    %v416 = vunpack.c.l.b16 %v112
    %v417 = vunpack.c.h.b16 %v112
    %v418 = vunpack.c.l.b16 %v113
    %v419 = vunpack.c.h.b16 %v113
    %v420 = vunpack.c.l.b16 %v114
    %v421 = vunpack.c.h.b16 %v114
    %v422 = vunpack.c.l.b16 %v115
    %v423 = vunpack.c.h.b16 %v115
    %v424 = vunpack.c.l.b16 %v116
    %v425 = vunpack.c.h.b16 %v116
    %v426 = vunpack.c.l.b16 %v117
    %v427 = vunpack.c.h.b16 %v117
    %v428 = vunpack.c.l.b16 %v118
    %v429 = vunpack.c.h.b16 %v118
    %v430 = vunpack.c.l.b16 %v119
    %v431 = vunpack.c.h.b16 %v119
    %v432 = vunpack.c.l.b16 %v120
    %v433 = vunpack.c.h.b16 %v120
    %v434 = vunpack.c.l.b16 %v121
    %v435 = vunpack.c.h.b16 %v121
    %v436 = vunpack.c.l.b16 %v122
    %v437 = vunpack.c.h.b16 %v122
    %v438 = vunpack.c.l.b16 %v123
    %v439 = vunpack.c.h.b16 %v123
    %v440 = vunpack.c.l.b16 %v124
    %v441 = vunpack.c.h.b16 %v124
    %v442 = vunpack.c.l.b16 %v125
    %v443 = vunpack.c.h.b16 %v125
    %v444 = vunpack.c.l.b16 %v126
    %v445 = vunpack.c.h.b16 %v126
    %v446 = vunpack.c.l.b16 %v127
    %v447 = vunpack.c.h.b16 %v127
    %v448 = vunpack.c.l.b16 %v128
    %v449 = vunpack.c.h.b16 %v128
    %v450 = vunpack.c.l.b16 %v129
    %v451 = vunpack.c.h.b16 %v129
    %v452 = vunpack.c.l.b16 %v130
    %v453 = vunpack.c.h.b16 %v130
    %v454 = vunpack.c.l.b16 %v131
    %v455 = vunpack.c.h.b16 %v131
    %v456 = vunpack.c.l.b16 %v132
    %v457 = vunpack.c.h.b16 %v132
    %v458 = vunpack.c.l.b16 %v133
    %v459 = vunpack.c.h.b16 %v133
    %v460 = vunpack.c.l.b16 %v134
    %v461 = vunpack.c.h.b16 %v134
    %v462 = vunpack.c.l.b16 %v135
    %v463 = vunpack.c.h.b16 %v135
    %v464 = vunpack.c.l.b16 %v136
    %v465 = vunpack.c.h.b16 %v136
    %v466 = vunpack.c.l.b16 %v137
    %v467 = vunpack.c.h.b16 %v137
    %v468 = vunpack.c.l.b16 %v138
    %v469 = vunpack.c.h.b16 %v138
    %v470 = vunpack.c.l.b16 %v139
    %v471 = vunpack.c.h.b16 %v139
    %v472 = vunpack.c.l.b16 %v140
    %v473 = vunpack.c.h.b16 %v140
    %v474 = vunpack.c.l.b16 %v141
    %v475 = vunpack.c.h.b16 %v141
    %v476 = vunpack.c.l.b16 %v142
    %v477 = vunpack.c.h.b16 %v142
    %v478 = vunpack.c.l.b16 %v143
    %v479 = vunpack.c.h.b16 %v143
    %v480 = vunpack.c.l.b16 %v144
    %v481 = vunpack.c.h.b16 %v144
    %v482 = vunpack.c.l.b16 %v145
    %v483 = vunpack.c.h.b16 %v145
    %v484 = vunpack.c.l.b16 %v146
    %v485 = vunpack.c.h.b16 %v146
    %v486 = vunpack.c.l.b16 %v147
    %v487 = vunpack.c.h.b16 %v147
    %v488 = vunpack.c.l.b16 %v148
    %v489 = vunpack.c.h.b16 %v148
    %v490 = vunpack.c.l.b16 %v149
    %v491 = vunpack.c.h.b16 %v149
    %v492 = vunpack.c.l.b16 %v150
    %v493 = vunpack.c.h.b16 %v150
    %v494 = vunpack.c.l.b16 %v151
    %v495 = vunpack.c.h.b16 %v151
    %v496 = vunpack.c.l.b16 %v152
    %v497 = vunpack.c.h.b16 %v152
    %v498 = vunpack.c.l.b16 %v153
    %v499 = vunpack.c.h.b16 %v153
    %v500 = vunpack.c.l.b16 %v154
    %v501 = vunpack.c.h.b16 %v154
    %v502 = vunpack.c.l.b16 %v155
    %v503 = vunpack.c.h.b16 %v155
    %v504 = vunpack.c.l.b16 %v156
    %v505 = vunpack.c.h.b16 %v156
    %v506 = vunpack.c.l.b16 %v157
    %v507 = vunpack.c.h.b16 %v157
    %v508 = vunpack.c.l.b16 %v158
    %v509 = vunpack.c.h.b16 %v158
    %v510 = vunpack.c.l.b16 %v159
    %v511 = vunpack.c.h.b16 %v159
    %v512 = vunpack.c.l.b16 %v160
    %v513 = vunpack.c.h.b16 %v160
    %v514 = vunpack.c.l.b16 %v161
    %v515 = vunpack.c.h.b16 %v161
    %v516 = vunpack.c.l.b16 %v162
    %v517 = vunpack.c.h.b16 %v162
    %v518 = vunpack.c.l.b16 %v163
    %v519 = vunpack.c.h.b16 %v163
    %v520 = vunpack.c.l.b16 %v164
    %v521 = vunpack.c.h.b16 %v164
    %v522 = vunpack.c.l.b16 %v165
    %v523 = vunpack.c.h.b16 %v165
    %v524 = vunpack.c.l.b16 %v166
    %v525 = vunpack.c.h.b16 %v166
    %v526 = vunpack.c.l.b16 %v167
    %v527 = vunpack.c.h.b16 %v167
    %v528 = vunpack.c.l.b16 %v168
    %v529 = vunpack.c.h.b16 %v168
    %v530 = vunpack.c.l.b16 %v169
    %v531 = vunpack.c.h.b16 %v169
    %v532 = vunpack.c.l.b16 %v170
    %v533 = vunpack.c.h.b16 %v170
    %v534 = vunpack.c.l.b16 %v171
    %v535 = vunpack.c.h.b16 %v171
    %v536 = vunpack.c.l.b16 %v172
    %v537 = vunpack.c.h.b16 %v172
    %v538 = vunpack.c.l.b16 %v173
    %v539 = vunpack.c.h.b16 %v173
    %v540 = vunpack.c.l.b16 %v174
    %v541 = vunpack.c.h.b16 %v174
    %v542 = vunpack.c.l.b16 %v175
    %v543 = vunpack.c.h.b16 %v175
    %v544 = vunpack.c.l.b16 %v176
    %v545 = vunpack.c.h.b16 %v176
    %v546 = vunpack.c.l.b16 %v177
    %v547 = vunpack.c.h.b16 %v177
    %v548 = vunpack.c.l.b16 %v178
    %v549 = vunpack.c.h.b16 %v178
    %v550 = vunpack.c.l.b16 %v179
    %v551 = vunpack.c.h.b16 %v179
    %v552 = vunpack.c.l.b16 %v180
    %v553 = vunpack.c.h.b16 %v180
    %v554 = vunpack.c.l.b16 %v181
    %v555 = vunpack.c.h.b16 %v181
    %v556 = vunpack.c.l.b16 %v182
    %v557 = vunpack.c.h.b16 %v182
    %v558 = vunpack.c.l.b16 %v183
    %v559 = vunpack.c.h.b16 %v183
    %v560 = vunpack.c.l.b16 %v184
    %v561 = vunpack.c.h.b16 %v184
    %v562 = vunpack.c.l.b16 %v185
    %v563 = vunpack.c.h.b16 %v185
    %v564 = vunpack.c.l.b16 %v186
    %v565 = vunpack.c.h.b16 %v186
    %v566 = vunpack.c.l.b16 %v187
    %v567 = vunpack.c.h.b16 %v187
    %v568 = vunpack.c.l.b16 %v188
    %v569 = vunpack.c.h.b16 %v188
    %v570 = vunpack.c.l.b16 %v189
    %v571 = vunpack.c.h.b16 %v189
    %v572 = vunpack.c.l.b16 %v190
    %v573 = vunpack.c.h.b16 %v190
    %v574 = vunpack.c.l.b16 %v191
    %v575 = vunpack.c.h.b16 %v191
    %v576 = vunpack.c.l.b16 %v192
    %v577 = vunpack.c.h.b16 %v192
    %v578 = vunpack.c.l.b16 %v193
    %v579 = vunpack.c.h.b16 %v193
    %v580 = vunpack.c.l.b16 %v194
    %v581 = vunpack.c.h.b16 %v194
    %v582 = vunpack.c.l.b16 %v195
    %v583 = vunpack.c.h.b16 %v195
    %v584 = vunpack.c.l.b16 %v196
    %v585 = vunpack.c.h.b16 %v196
    %v586 = vunpack.c.l.b16 %v197
    %v587 = vunpack.c.h.b16 %v197
    %v588 = vunpack.c.l.b16 %v198
    %v589 = vunpack.c.h.b16 %v198
    %v590 = vunpack.c.l.b16 %v199
    %v591 = vunpack.c.h.b16 %v199
    %v592 = vunpack.c.l.b16 %v200
    %v593 = vunpack.c.h.b16 %v200
    %v594 = vunpack.c.l.b16 %v201
    %v595 = vunpack.c.h.b16 %v201
    %v596 = vunpack.c.l.b16 %v202
    %v597 = vunpack.c.h.b16 %v202
    %v598 = vunpack.c.l.b16 %v203
    %v599 = vunpack.c.h.b16 %v203
    %v600 = vunpack.c.l.b16 %v204
    %v601 = vunpack.c.h.b16 %v204
    %v602 = vunpack.c.l.b16 %v205
    %v603 = vunpack.c.h.b16 %v205
    %v604 = vunpack.c.l.b16 %v206
    %v605 = vunpack.c.h.b16 %v206
    %v606 = vunpack.c.l.b16 %v207
    %v607 = vunpack.c.h.b16 %v207
    %v608 = vunpack.c.l.b16 %v208
    %v609 = vunpack.c.h.b16 %v208
    %v610 = vunpack.c.l.b16 %v209
    %v611 = vunpack.c.h.b16 %v209
    %v612 = vunpack.c.l.b16 %v210
    %v613 = vunpack.c.h.b16 %v210
    %v614 = vunpack.c.l.b16 %v211
    %v615 = vunpack.c.h.b16 %v211
    %v616 = vunpack.c.l.b16 %v212
    %v617 = vunpack.c.h.b16 %v212
    %v618 = vunpack.c.l.b16 %v213
    %v619 = vunpack.c.h.b16 %v213
    %v620 = vunpack.c.l.b16 %v214
    %v621 = vunpack.c.h.b16 %v214
    %v622 = vunpack.c.l.b16 %v215
    %v623 = vunpack.c.h.b16 %v215
    %v624 = vunpack.c.l.b16 %v216
    %v625 = vunpack.c.h.b16 %v216
    %v626 = vunpack.c.l.b16 %v217
    %v627 = vunpack.c.h.b16 %v217
    %v628 = vunpack.c.l.b16 %v218
    %v629 = vunpack.c.h.b16 %v218
    %v630 = vunpack.c.l.b16 %v219
    %v631 = vunpack.c.h.b16 %v219
    %v632 = vunpack.c.l.b16 %v220
    %v633 = vunpack.c.h.b16 %v220
    %v634 = vunpack.c.l.b16 %v221
    %v635 = vunpack.c.h.b16 %v221
    %v636 = vunpack.c.l.b16 %v222
    %v637 = vunpack.c.h.b16 %v222
    %v638 = vunpack.c.l.b16 %v223
    %v639 = vunpack.c.h.b16 %v223
    %v640 = vunpack.c.l.b16 %v224
    %v641 = vunpack.c.h.b16 %v224
    %v642 = vunpack.c.l.b16 %v225
    %v643 = vunpack.c.h.b16 %v225
    %v644 = vunpack.c.l.b16 %v226
    %v645 = vunpack.c.h.b16 %v226
    %v646 = vunpack.c.l.b16 %v227
    %v647 = vunpack.c.h.b16 %v227
    %v648 = vunpack.c.l.b16 %v228
    %v649 = vunpack.c.h.b16 %v228
    %v650 = vunpack.c.l.b16 %v229
    %v651 = vunpack.c.h.b16 %v229
    %v652 = vunpack.c.l.b16 %v230
    %v653 = vunpack.c.h.b16 %v230
    %v654 = vunpack.c.l.b16 %v231
    %v655 = vunpack.c.h.b16 %v231
    %v656 = vunpack.c.l.b16 %v232
    %v657 = vunpack.c.h.b16 %v232
    %v658 = vunpack.c.l.b16 %v233
    %v659 = vunpack.c.h.b16 %v233
    %v660 = vpack.c.b16 %v408, %v404
    %v661 = vpack.c.b16 %v409, %v405
    %v662 = vpack.c.b16 %v410, %v406
    %v663 = vpack.c.b16 %v411, %v407
    %v664 = vpack.c.b16 %v416, %v412
    %v665 = vpack.c.b16 %v417, %v413
    %v666 = vpack.c.b16 %v418, %v414
    %v667 = vpack.c.b16 %v419, %v415
    %v668 = vpack.c.b16 %v424, %v420
    %v669 = vpack.c.b16 %v425, %v421
    %v670 = vpack.c.b16 %v426, %v422
    %v671 = vpack.c.b16 %v427, %v423
    %v672 = vpack.c.b16 %v432, %v428
    %v673 = vpack.c.b16 %v433, %v429
    %v674 = vpack.c.b16 %v434, %v430
    %v675 = vpack.c.b16 %v435, %v431
    %v676 = vpack.c.b16 %v440, %v436
    %v677 = vpack.c.b16 %v441, %v437
    %v678 = vpack.c.b16 %v442, %v438
    %v679 = vpack.c.b16 %v443, %v439
    %v680 = vpack.c.b16 %v448, %v444
    %v681 = vpack.c.b16 %v449, %v445
    %v682 = vpack.c.b16 %v450, %v446
    %v683 = vpack.c.b16 %v451, %v447
    %v684 = vpack.c.b16 %v456, %v452
    %v685 = vpack.c.b16 %v457, %v453
    %v686 = vpack.c.b16 %v458, %v454
    %v687 = vpack.c.b16 %v459, %v455
    %v688 = vpack.c.b16 %v464, %v460
    %v689 = vpack.c.b16 %v465, %v461
    %v690 = vpack.c.b16 %v466, %v462
    %v691 = vpack.c.b16 %v467, %v463
    %v692 = vpack.c.b16 %v472, %v468
    %v693 = vpack.c.b16 %v473, %v469
    %v694 = vpack.c.b16 %v474, %v470
    %v695 = vpack.c.b16 %v475, %v471
    %v696 = vpack.c.b16 %v480, %v476
    %v697 = vpack.c.b16 %v481, %v477
    %v698 = vpack.c.b16 %v482, %v478
    %v699 = vpack.c.b16 %v483, %v479
    %v700 = vpack.c.b16 %v488, %v484
    %v701 = vpack.c.b16 %v489, %v485
    %v702 = vpack.c.b16 %v490, %v486
    %v703 = vpack.c.b16 %v491, %v487
    %v704 = vpack.c.b16 %v496, %v492
    %v705 = vpack.c.b16 %v497, %v493
    %v706 = vpack.c.b16 %v498, %v494
    %v707 = vpack.c.b16 %v499, %v495
    %v708 = vpack.c.b16 %v504, %v500
    %v709 = vpack.c.b16 %v505, %v501
    %v710 = vpack.c.b16 %v506, %v502
    %v711 = vpack.c.b16 %v507, %v503
    %v712 = vpack.c.b16 %v512, %v508
    %v713 = vpack.c.b16 %v513, %v509
    %v714 = vpack.c.b16 %v514, %v510
    %v715 = vpack.c.b16 %v515, %v511
    %v716 = vpack.c.b16 %v520, %v516
    %v717 = vpack.c.b16 %v521, %v517
    %v718 = vpack.c.b16 %v522, %v518
    %v719 = vpack.c.b16 %v523, %v519
    %v720 = vpack.c.b16 %v528, %v524
    %v721 = vpack.c.b16 %v529, %v525
    %v722 = vpack.c.b16 %v530, %v526
    %v723 = vpack.c.b16 %v531, %v527
    %v724 = vpack.c.b16 %v536, %v532
    %v725 = vpack.c.b16 %v537, %v533
    %v726 = vpack.c.b16 %v538, %v534
    %v727 = vpack.c.b16 %v539, %v535
    %v728 = vpack.c.b16 %v544, %v540
    %v729 = vpack.c.b16 %v545, %v541
    %v730 = vpack.c.b16 %v546, %v542
    %v731 = vpack.c.b16 %v547, %v543
    %v732 = vpack.c.b16 %v552, %v548
    %v733 = vpack.c.b16 %v553, %v549
    %v734 = vpack.c.b16 %v554, %v550
    %v735 = vpack.c.b16 %v555, %v551
    %v736 = vpack.c.b16 %v560, %v556
    %v737 = vpack.c.b16 %v561, %v557
    %v738 = vpack.c.b16 %v562, %v558
    %v739 = vpack.c.b16 %v563, %v559
    %v740 = vpack.c.b16 %v568, %v564
    %v741 = vpack.c.b16 %v569, %v565
    %v742 = vpack.c.b16 %v570, %v566
    %v743 = vpack.c.b16 %v571, %v567
    %v744 = vpack.c.b16 %v576, %v572
    %v745 = vpack.c.b16 %v577, %v573
    %v746 = vpack.c.b16 %v578, %v574
    %v747 = vpack.c.b16 %v579, %v575
    %v748 = vpack.c.b16 %v584, %v580
    %v749 = vpack.c.b16 %v585, %v581
    %v750 = vpack.c.b16 %v586, %v582
    %v751 = vpack.c.b16 %v587, %v583
    %v752 = vpack.c.b16 %v592, %v588
    %v753 = vpack.c.b16 %v593, %v589
    %v754 = vpack.c.b16 %v594, %v590
    %v755 = vpack.c.b16 %v595, %v591
    %v756 = vpack.c.b16 %v600, %v596
    %v757 = vpack.c.b16 %v601, %v597
    %v758 = vpack.c.b16 %v602, %v598
    %v759 = vpack.c.b16 %v603, %v599
    %v760 = vpack.c.b16 %v608, %v604
    %v761 = vpack.c.b16 %v609, %v605
    %v762 = vpack.c.b16 %v610, %v606
    %v763 = vpack.c.b16 %v611, %v607
    %v764 = vpack.c.b16 %v616, %v612
    %v765 = vpack.c.b16 %v617, %v613
    %v766 = vpack.c.b16 %v618, %v614
    %v767 = vpack.c.b16 %v619, %v615
    %v768 = vpack.c.b16 %v624, %v620
    %v769 = vpack.c.b16 %v625, %v621
    %v770 = vpack.c.b16 %v626, %v622
    %v771 = vpack.c.b16 %v627, %v623
    %v772 = vpack.c.b16 %v632, %v628
    %v773 = vpack.c.b16 %v633, %v629
    %v774 = vpack.c.b16 %v634, %v630
    %v775 = vpack.c.b16 %v635, %v631
    %v776 = vpack.c.b16 %v640, %v636
    %v777 = vpack.c.b16 %v641, %v637
    %v778 = vpack.c.b16 %v642, %v638
    %v779 = vpack.c.b16 %v643, %v639
    %v780 = vpack.c.b16 %v648, %v644
    %v781 = vpack.c.b16 %v649, %v645
    %v782 = vpack.c.b16 %v650, %v646
    %v783 = vpack.c.b16 %v651, %v647
    %v784 = vpack.c.b16 %v656, %v652
    %v785 = vpack.c.b16 %v657, %v653
    %v786 = vpack.c.b16 %v658, %v654
    %v787 = vpack.c.b16 %v659, %v655
    %916 = vmatprep.subr.bf16.mxu0 %v661
    %917 = vmatpush1.bf16.msra.mxu0 %v660
    %918 = vmatprep.subr.bf16.mxu0 %v665
    %919 = vmatpush1.bf16.msra.mxu0 %v664
    %920 = vmatprep.subr.bf16.mxu0 %v669
    %921 = vmatpush1.bf16.msra.mxu0 %v668
    %922 = vmatprep.subr.bf16.mxu0 %v673
    %923 = vmatpush1.bf16.msra.mxu0 %v672
    %924 = vmatprep.subr.bf16.mxu0 %v677
    %925 = vmatpush1.bf16.msra.mxu0 %v676
    %926 = vmatprep.subr.bf16.mxu0 %v681
    %927 = vmatpush1.bf16.msra.mxu0 %v680
    %928 = vmatprep.subr.bf16.mxu0 %v685
    %929 = vmatpush1.bf16.msra.mxu0 %v684
    %930 = vmatprep.subr.bf16.mxu0 %v689
    %931 = vmatpush1.bf16.msra.mxu0 %v688
    %932 = vmatprep.subr.bf16.mxu0 %v693
    %933 = vmatpush1.bf16.msra.mxu0 %v692
    %934 = vmatprep.subr.bf16.mxu0 %v697
    %935 = vmatpush1.bf16.msra.mxu0 %v696
    %936 = vmatprep.subr.bf16.mxu0 %v701
    %937 = vmatpush1.bf16.msra.mxu0 %v700
    %938 = vmatprep.subr.bf16.mxu0 %v705
    %939 = vmatpush1.bf16.msra.mxu0 %v704
    %940 = vmatprep.subr.bf16.mxu0 %v709
    %941 = vmatpush1.bf16.msra.mxu0 %v708
    %942 = vmatprep.subr.bf16.mxu0 %v713
    %943 = vmatpush1.bf16.msra.mxu0 %v712
    %944 = vmatprep.subr.bf16.mxu0 %v717
    %945 = vmatpush1.bf16.msra.mxu0 %v716
    %946 = vmatprep.subr.bf16.mxu0 %v721
    %947 = vmatpush1.bf16.msra.mxu0 %v720
    %948 = vmatprep.mubr.bf16.mxu0 %v269
    %949 = vmatmul.mubr.bf16.gmra.mrb[0].mxu0 %v268
    %v950 = vpop.f32.mrb[0].mxu0
    %v951 = vadd.f32 %v239, %v950
    %v952 = vpop.f32.mrb[0].mxu0
    %v953 = vadd.f32 %v243, %v952
    %v954 = vpop.f32.mrb[0].mxu0
    %v955 = vadd.f32 %v239, %v954
    %v956 = vpop.f32.mrb[0].mxu0
    %v957 = vadd.f32 %v243, %v956
    %958 = vdwg.mxu0
    %959 = vmatprep.subr.bf16.mxu0 %v725
    %960 = vmatpush1.bf16.msra.mxu0 %v724
    %961 = vmatprep.subr.bf16.mxu0 %v729
    %962 = vmatpush1.bf16.msra.mxu0 %v728
    %963 = vmatprep.subr.bf16.mxu0 %v733
    %964 = vmatpush1.bf16.msra.mxu0 %v732
    %965 = vmatprep.subr.bf16.mxu0 %v737
    %966 = vmatpush1.bf16.msra.mxu0 %v736
    %967 = vmatprep.subr.bf16.mxu0 %v741
    %968 = vmatpush1.bf16.msra.mxu0 %v740
    %969 = vmatprep.subr.bf16.mxu0 %v745
    %970 = vmatpush1.bf16.msra.mxu0 %v744
    %971 = vmatprep.subr.bf16.mxu0 %v749
    %972 = vmatpush1.bf16.msra.mxu0 %v748
    %973 = vmatprep.subr.bf16.mxu0 %v753
    %974 = vmatpush1.bf16.msra.mxu0 %v752
    %975 = vmatprep.subr.bf16.mxu0 %v757
    %976 = vmatpush1.bf16.msra.mxu0 %v756
    %977 = vmatprep.subr.bf16.mxu0 %v761
    %978 = vmatpush1.bf16.msra.mxu0 %v760
    %979 = vmatprep.subr.bf16.mxu0 %v765
    %980 = vmatpush1.bf16.msra.mxu0 %v764
    %981 = vmatprep.subr.bf16.mxu0 %v769
    %982 = vmatpush1.bf16.msra.mxu0 %v768
    %983 = vmatprep.subr.bf16.mxu0 %v773
    %984 = vmatpush1.bf16.msra.mxu0 %v772
    %985 = vmatprep.subr.bf16.mxu0 %v777
    %986 = vmatpush1.bf16.msra.mxu0 %v776
    %987 = vmatprep.subr.bf16.mxu0 %v781
    %988 = vmatpush1.bf16.msra.mxu0 %v780
    %989 = vmatprep.subr.bf16.mxu0 %v785
    %990 = vmatpush1.bf16.msra.mxu0 %v784
    %991 = vmatprep.mubr.bf16.mxu0 %v271
    %992 = vmatmul.mubr.bf16.gmra.mrb[0].mxu0 %v270
    %v993 = vpop.f32.mrb[0].mxu0
    %v994 = vadd.f32 %v951, %v993
    %v995 = vpop.f32.mrb[0].mxu0
    %v996 = vadd.f32 %v953, %v995
    %v997 = vpop.f32.mrb[0].mxu0
    %v998 = vadd.f32 %v955, %v997
    %v999 = vpop.f32.mrb[0].mxu0
    %v1000 = vadd.f32 %v957, %v999
    %1001 = vdwg.mxu0
    %1002 = vmatprep.subr.bf16.mxu0 %v663
    %1003 = vmatpush1.bf16.msra.mxu0 %v662
    %1004 = vmatprep.subr.bf16.mxu0 %v667
    %1005 = vmatpush1.bf16.msra.mxu0 %v666
    %1006 = vmatprep.subr.bf16.mxu0 %v671
    %1007 = vmatpush1.bf16.msra.mxu0 %v670
    %1008 = vmatprep.subr.bf16.mxu0 %v675
    %1009 = vmatpush1.bf16.msra.mxu0 %v674
    %1010 = vmatprep.subr.bf16.mxu0 %v679
    %1011 = vmatpush1.bf16.msra.mxu0 %v678
    %1012 = vmatprep.subr.bf16.mxu0 %v683
    %1013 = vmatpush1.bf16.msra.mxu0 %v682
    %1014 = vmatprep.subr.bf16.mxu0 %v687
    %1015 = vmatpush1.bf16.msra.mxu0 %v686
    %1016 = vmatprep.subr.bf16.mxu0 %v691
    %1017 = vmatpush1.bf16.msra.mxu0 %v690
    %1018 = vmatprep.subr.bf16.mxu0 %v695
    %1019 = vmatpush1.bf16.msra.mxu0 %v694
    %1020 = vmatprep.subr.bf16.mxu0 %v699
    %1021 = vmatpush1.bf16.msra.mxu0 %v698
    %1022 = vmatprep.subr.bf16.mxu0 %v703
    %1023 = vmatpush1.bf16.msra.mxu0 %v702
    %1024 = vmatprep.subr.bf16.mxu0 %v707
    %1025 = vmatpush1.bf16.msra.mxu0 %v706
    %1026 = vmatprep.subr.bf16.mxu0 %v711
    %1027 = vmatpush1.bf16.msra.mxu0 %v710
    %1028 = vmatprep.subr.bf16.mxu0 %v715
    %1029 = vmatpush1.bf16.msra.mxu0 %v714
    %1030 = vmatprep.subr.bf16.mxu0 %v719
    %1031 = vmatpush1.bf16.msra.mxu0 %v718
    %1032 = vmatprep.subr.bf16.mxu0 %v723
    %1033 = vmatpush1.bf16.msra.mxu0 %v722
    %1034 = vmatprep.mubr.bf16.mxu0 %v269
    %1035 = vmatmul.mubr.bf16.gmra.mrb[0].mxu0 %v268
    %v1036 = vpop.f32.mrb[0].mxu0
    %v1037 = vadd.f32 %v247, %v1036
    %v1038 = vpop.f32.mrb[0].mxu0
    %v1039 = vadd.f32 %v251, %v1038
    %v1040 = vpop.f32.mrb[0].mxu0
    %v1041 = vadd.f32 %v247, %v1040
    %v1042 = vpop.f32.mrb[0].mxu0
    %v1043 = vadd.f32 %v251, %v1042
    %1044 = vdwg.mxu0
    %1045 = vmatprep.subr.bf16.mxu0 %v727
    %1046 = vmatpush1.bf16.msra.mxu0 %v726
    %1047 = vmatprep.subr.bf16.mxu0 %v731
    %1048 = vmatpush1.bf16.msra.mxu0 %v730
    %1049 = vmatprep.subr.bf16.mxu0 %v735
    %1050 = vmatpush1.bf16.msra.mxu0 %v734
    %1051 = vmatprep.subr.bf16.mxu0 %v739
    %1052 = vmatpush1.bf16.msra.mxu0 %v738
    %1053 = vmatprep.subr.bf16.mxu0 %v743
    %1054 = vmatpush1.bf16.msra.mxu0 %v742
    %1055 = vmatprep.subr.bf16.mxu0 %v747
    %1056 = vmatpush1.bf16.msra.mxu0 %v746
    %1057 = vmatprep.subr.bf16.mxu0 %v751
    %1058 = vmatpush1.bf16.msra.mxu0 %v750
    %1059 = vmatprep.subr.bf16.mxu0 %v755
    %1060 = vmatpush1.bf16.msra.mxu0 %v754
    %1061 = vmatprep.subr.bf16.mxu0 %v759
    %1062 = vmatpush1.bf16.msra.mxu0 %v758
    %1063 = vmatprep.subr.bf16.mxu0 %v763
    %1064 = vmatpush1.bf16.msra.mxu0 %v762
    %1065 = vmatprep.subr.bf16.mxu0 %v767
    %1066 = vmatpush1.bf16.msra.mxu0 %v766
    %1067 = vmatprep.subr.bf16.mxu0 %v771
    %1068 = vmatpush1.bf16.msra.mxu0 %v770
    %1069 = vmatprep.subr.bf16.mxu0 %v775
    %1070 = vmatpush1.bf16.msra.mxu0 %v774
    %1071 = vmatprep.subr.bf16.mxu0 %v779
    %1072 = vmatpush1.bf16.msra.mxu0 %v778
    %1073 = vmatprep.subr.bf16.mxu0 %v783
    %1074 = vmatpush1.bf16.msra.mxu0 %v782
    %1075 = vmatprep.subr.bf16.mxu0 %v787
    %1076 = vmatpush1.bf16.msra.mxu0 %v786
    %1077 = vmatprep.mubr.bf16.mxu0 %v271
    %1078 = vmatmul.mubr.bf16.gmra.mrb[0].mxu0 %v270
    %v1079 = vpop.f32.mrb[0].mxu0
    %v1080 = vadd.f32 %v1037, %v1079
    %v1081 = vpop.f32.mrb[0].mxu0
    %v1082 = vadd.f32 %v1039, %v1081
    %v1083 = vpop.f32.mrb[0].mxu0
    %v1084 = vadd.f32 %v1041, %v1083
    %v1085 = vpop.f32.mrb[0].mxu0
    %v1086 = vadd.f32 %v1043, %v1085
    %1087 = vdwg.mxu0
    %v1088 = vmax.f32 %v994, 0.0
    %v1089 = vmax.f32 %v996, 0.0
    %v1090 = vmax.f32 %v1080, 0.0
    %v1091 = vmax.f32 %v1082, 0.0
    %v1092 = vmax.f32 %v998, 0.0
    %v1093 = vmax.f32 %v1000, 0.0
    %v1094 = vmax.f32 %v1084, 0.0
    %v1095 = vmax.f32 %v1086, 0.0
    %v1096 = vpack.c.bf16 %v1092, %v1088
    %v1097 = vpack.c.bf16 %v1093, %v1089
    %v1098 = vpack.c.bf16 %v1094, %v1090
    %v1099 = vpack.c.bf16 %v1095, %v1091
    %v1100 = vld [vmem:[#allocation7] sm:$0xff]
    %v1101 = vld [vmem:[#allocation7 + $0x8] sm:$0xff]
    %v1102 = vld [vmem:[#allocation7 + $0x10] sm:$0xff]
    %v1103 = vld [vmem:[#allocation7 + $0x18] sm:$0xff]
    %v1104 = vld [vmem:[#allocation7 + $0x20] sm:$0xff]
    %v1105 = vld [vmem:[#allocation7 + $0x28] sm:$0xff]
    %v1106 = vld [vmem:[#allocation7 + $0x30] sm:$0xff]
    %v1107 = vld [vmem:[#allocation7 + $0x38] sm:$0xff]
    %v1108 = vld [vmem:[#allocation7 + $0x40] sm:$0xff]
    %v1109 = vld [vmem:[#allocation7 + $0x48] sm:$0xff]
    %v1110 = vld [vmem:[#allocation7 + $0x50] sm:$0xff]
    %v1111 = vld [vmem:[#allocation7 + $0x58] sm:$0xff]
    %v1112 = vld [vmem:[#allocation7 + $0x60] sm:$0xff]
    %v1113 = vld [vmem:[#allocation7 + $0x68] sm:$0xff]
    %v1114 = vld [vmem:[#allocation7 + $0x70] sm:$0xff]
    %v1115 = vld [vmem:[#allocation7 + $0x78] sm:$0xff]
    %v1116 = vld [vmem:[#allocation7 + $0x80] sm:$0xff]
    %v1117 = vld [vmem:[#allocation7 + $0x88] sm:$0xff]
    %v1118 = vld [vmem:[#allocation7 + $0x90] sm:$0xff]
    %v1119 = vld [vmem:[#allocation7 + $0x98] sm:$0xff]
    %v1120 = vld [vmem:[#allocation7 + $0xa0] sm:$0xff]
    %v1121 = vld [vmem:[#allocation7 + $0xa8] sm:$0xff]
    %v1122 = vld [vmem:[#allocation7 + $0xb0] sm:$0xff]
    %v1123 = vld [vmem:[#allocation7 + $0xb8] sm:$0xff]
    %v1124 = vld [vmem:[#allocation7 + $0xc0] sm:$0xff]
    %v1125 = vld [vmem:[#allocation7 + $0xc8] sm:$0xff]
    %v1126 = vld [vmem:[#allocation7 + $0xd0] sm:$0xff]
    %v1127 = vld [vmem:[#allocation7 + $0xd8] sm:$0xff]
    %v1128 = vld [vmem:[#allocation7 + $0xe0] sm:$0xff]
    %v1129 = vld [vmem:[#allocation7 + $0xe8] sm:$0xff]
    %v1130 = vld [vmem:[#allocation7 + $0xf0] sm:$0xff]
    %v1131 = vld [vmem:[#allocation7 + $0xf8] sm:$0xff]
    %v1132 = vld [vmem:[#allocation7 + $0x100] sm:$0xff]
    %v1133 = vld [vmem:[#allocation7 + $0x108] sm:$0xff]
    %v1134 = vld [vmem:[#allocation7 + $0x110] sm:$0xff]
    %v1135 = vld [vmem:[#allocation7 + $0x118] sm:$0xff]
    %v1136 = vld [vmem:[#allocation7 + $0x120] sm:$0xff]
    %v1137 = vld [vmem:[#allocation7 + $0x128] sm:$0xff]
    %v1138 = vld [vmem:[#allocation7 + $0x130] sm:$0xff]
    %v1139 = vld [vmem:[#allocation7 + $0x138] sm:$0xff]
    %v1140 = vld [vmem:[#allocation7 + $0x140] sm:$0xff]
    %v1141 = vld [vmem:[#allocation7 + $0x148] sm:$0xff]
    %v1142 = vld [vmem:[#allocation7 + $0x150] sm:$0xff]
    %v1143 = vld [vmem:[#allocation7 + $0x158] sm:$0xff]
    %v1144 = vld [vmem:[#allocation7 + $0x160] sm:$0xff]
    %v1145 = vld [vmem:[#allocation7 + $0x168] sm:$0xff]
    %v1146 = vld [vmem:[#allocation7 + $0x170] sm:$0xff]
    %v1147 = vld [vmem:[#allocation7 + $0x178] sm:$0xff]
    %v1148 = vld [vmem:[#allocation7 + $0x180] sm:$0xff]
    %v1149 = vld [vmem:[#allocation7 + $0x188] sm:$0xff]
    %v1150 = vld [vmem:[#allocation7 + $0x190] sm:$0xff]
    %v1151 = vld [vmem:[#allocation7 + $0x198] sm:$0xff]
    %v1152 = vld [vmem:[#allocation7 + $0x1a0] sm:$0xff]
    %v1153 = vld [vmem:[#allocation7 + $0x1a8] sm:$0xff]
    %v1154 = vld [vmem:[#allocation7 + $0x1b0] sm:$0xff]
    %v1155 = vld [vmem:[#allocation7 + $0x1b8] sm:$0xff]
    %v1156 = vld [vmem:[#allocation7 + $0x1c0] sm:$0xff]
    %v1157 = vld [vmem:[#allocation7 + $0x1c8] sm:$0xff]
    %v1158 = vld [vmem:[#allocation7 + $0x1d0] sm:$0xff]
    %v1159 = vld [vmem:[#allocation7 + $0x1d8] sm:$0xff]
    %v1160 = vld [vmem:[#allocation7 + $0x1e0] sm:$0xff]
    %v1161 = vld [vmem:[#allocation7 + $0x1e8] sm:$0xff]
    %v1162 = vld [vmem:[#allocation7 + $0x1f0] sm:$0xff]
    %v1163 = vld [vmem:[#allocation7 + $0x1f8] sm:$0xff]
    %v1164 = vld [vmem:[%s4] sm:$0x3]
    %v1166 = vlaneseq
    %v1167 = vshrl.u32 %v1166, 7
    %v1168 = vsub.s32 0, %v1167
    %v1169 = vrot.slane %v1164, %v1168
    %v1170 = vlaneseq
    %v1171 = vshrl.u32 %v1170, 7
    %v1172 = vsub.s32 1, %v1171
    %v1173 = vrot.slane %v1164, %v1172
    %v1240 = vunpack.c.l.b16 %v1100
    %v1241 = vunpack.c.h.b16 %v1100
    %v1242 = vunpack.c.l.b16 %v1101
    %v1243 = vunpack.c.h.b16 %v1101
    %v1244 = vunpack.c.l.b16 %v1102
    %v1245 = vunpack.c.h.b16 %v1102
    %v1246 = vunpack.c.l.b16 %v1103
    %v1247 = vunpack.c.h.b16 %v1103
    %v1248 = vunpack.c.l.b16 %v1104
    %v1249 = vunpack.c.h.b16 %v1104
    %v1250 = vunpack.c.l.b16 %v1105
    %v1251 = vunpack.c.h.b16 %v1105
    %v1252 = vunpack.c.l.b16 %v1106
    %v1253 = vunpack.c.h.b16 %v1106
    %v1254 = vunpack.c.l.b16 %v1107
    %v1255 = vunpack.c.h.b16 %v1107
    %v1256 = vunpack.c.l.b16 %v1108
    %v1257 = vunpack.c.h.b16 %v1108
    %v1258 = vunpack.c.l.b16 %v1109
    %v1259 = vunpack.c.h.b16 %v1109
    %v1260 = vunpack.c.l.b16 %v1110
    %v1261 = vunpack.c.h.b16 %v1110
    %v1262 = vunpack.c.l.b16 %v1111
    %v1263 = vunpack.c.h.b16 %v1111
    %v1264 = vunpack.c.l.b16 %v1112
    %v1265 = vunpack.c.h.b16 %v1112
    %v1266 = vunpack.c.l.b16 %v1113
    %v1267 = vunpack.c.h.b16 %v1113
    %v1268 = vunpack.c.l.b16 %v1114
    %v1269 = vunpack.c.h.b16 %v1114
    %v1270 = vunpack.c.l.b16 %v1115
    %v1271 = vunpack.c.h.b16 %v1115
    %v1272 = vunpack.c.l.b16 %v1116
    %v1273 = vunpack.c.h.b16 %v1116
    %v1274 = vunpack.c.l.b16 %v1117
    %v1275 = vunpack.c.h.b16 %v1117
    %v1276 = vunpack.c.l.b16 %v1118
    %v1277 = vunpack.c.h.b16 %v1118
    %v1278 = vunpack.c.l.b16 %v1119
    %v1279 = vunpack.c.h.b16 %v1119
    %v1280 = vunpack.c.l.b16 %v1120
    %v1281 = vunpack.c.h.b16 %v1120
    %v1282 = vunpack.c.l.b16 %v1121
    %v1283 = vunpack.c.h.b16 %v1121
    %v1284 = vunpack.c.l.b16 %v1122
    %v1285 = vunpack.c.h.b16 %v1122
    %v1286 = vunpack.c.l.b16 %v1123
    %v1287 = vunpack.c.h.b16 %v1123
    %v1288 = vunpack.c.l.b16 %v1124
    %v1289 = vunpack.c.h.b16 %v1124
    %v1290 = vunpack.c.l.b16 %v1125
    %v1291 = vunpack.c.h.b16 %v1125
    %v1292 = vunpack.c.l.b16 %v1126
    %v1293 = vunpack.c.h.b16 %v1126
    %v1294 = vunpack.c.l.b16 %v1127
    %v1295 = vunpack.c.h.b16 %v1127
    %v1296 = vunpack.c.l.b16 %v1128
    %v1297 = vunpack.c.h.b16 %v1128
    %v1298 = vunpack.c.l.b16 %v1129
    %v1299 = vunpack.c.h.b16 %v1129
    %v1300 = vunpack.c.l.b16 %v1130
    %v1301 = vunpack.c.h.b16 %v1130
    %v1302 = vunpack.c.l.b16 %v1131
    %v1303 = vunpack.c.h.b16 %v1131
    %v1304 = vunpack.c.l.b16 %v1132
    %v1305 = vunpack.c.h.b16 %v1132
    %v1306 = vunpack.c.l.b16 %v1133
    %v1307 = vunpack.c.h.b16 %v1133
    %v1308 = vunpack.c.l.b16 %v1134
    %v1309 = vunpack.c.h.b16 %v1134
    %v1310 = vunpack.c.l.b16 %v1135
    %v1311 = vunpack.c.h.b16 %v1135
    %v1312 = vunpack.c.l.b16 %v1136
    %v1313 = vunpack.c.h.b16 %v1136
    %v1314 = vunpack.c.l.b16 %v1137
    %v1315 = vunpack.c.h.b16 %v1137
    %v1316 = vunpack.c.l.b16 %v1138
    %v1317 = vunpack.c.h.b16 %v1138
    %v1318 = vunpack.c.l.b16 %v1139
    %v1319 = vunpack.c.h.b16 %v1139
    %v1320 = vunpack.c.l.b16 %v1140
    %v1321 = vunpack.c.h.b16 %v1140
    %v1322 = vunpack.c.l.b16 %v1141
    %v1323 = vunpack.c.h.b16 %v1141
    %v1324 = vunpack.c.l.b16 %v1142
    %v1325 = vunpack.c.h.b16 %v1142
    %v1326 = vunpack.c.l.b16 %v1143
    %v1327 = vunpack.c.h.b16 %v1143
    %v1328 = vunpack.c.l.b16 %v1144
    %v1329 = vunpack.c.h.b16 %v1144
    %v1330 = vunpack.c.l.b16 %v1145
    %v1331 = vunpack.c.h.b16 %v1145
    %v1332 = vunpack.c.l.b16 %v1146
    %v1333 = vunpack.c.h.b16 %v1146
    %v1334 = vunpack.c.l.b16 %v1147
    %v1335 = vunpack.c.h.b16 %v1147
    %v1336 = vunpack.c.l.b16 %v1148
    %v1337 = vunpack.c.h.b16 %v1148
    %v1338 = vunpack.c.l.b16 %v1149
    %v1339 = vunpack.c.h.b16 %v1149
    %v1340 = vunpack.c.l.b16 %v1150
    %v1341 = vunpack.c.h.b16 %v1150
    %v1342 = vunpack.c.l.b16 %v1151
    %v1343 = vunpack.c.h.b16 %v1151
    %v1344 = vunpack.c.l.b16 %v1152
    %v1345 = vunpack.c.h.b16 %v1152
    %v1346 = vunpack.c.l.b16 %v1153
    %v1347 = vunpack.c.h.b16 %v1153
    %v1348 = vunpack.c.l.b16 %v1154
    %v1349 = vunpack.c.h.b16 %v1154
    %v1350 = vunpack.c.l.b16 %v1155
    %v1351 = vunpack.c.h.b16 %v1155
    %v1352 = vunpack.c.l.b16 %v1156
    %v1353 = vunpack.c.h.b16 %v1156
    %v1354 = vunpack.c.l.b16 %v1157
    %v1355 = vunpack.c.h.b16 %v1157
    %v1356 = vunpack.c.l.b16 %v1158
    %v1357 = vunpack.c.h.b16 %v1158
    %v1358 = vunpack.c.l.b16 %v1159
    %v1359 = vunpack.c.h.b16 %v1159
    %v1360 = vunpack.c.l.b16 %v1160
    %v1361 = vunpack.c.h.b16 %v1160
    %v1362 = vunpack.c.l.b16 %v1161
    %v1363 = vunpack.c.h.b16 %v1161
    %v1364 = vunpack.c.l.b16 %v1162
    %v1365 = vunpack.c.h.b16 %v1162
    %v1366 = vunpack.c.l.b16 %v1163
    %v1367 = vunpack.c.h.b16 %v1163
    %v1368 = vpack.c.b16 %v1242, %v1240
    %v1369 = vpack.c.b16 %v1243, %v1241
    %v1370 = vpack.c.b16 %v1246, %v1244
    %v1371 = vpack.c.b16 %v1247, %v1245
    %v1372 = vpack.c.b16 %v1250, %v1248
    %v1373 = vpack.c.b16 %v1251, %v1249
    %v1374 = vpack.c.b16 %v1254, %v1252
    %v1375 = vpack.c.b16 %v1255, %v1253
    %v1376 = vpack.c.b16 %v1258, %v1256
    %v1377 = vpack.c.b16 %v1259, %v1257
    %v1378 = vpack.c.b16 %v1262, %v1260
    %v1379 = vpack.c.b16 %v1263, %v1261
    %v1380 = vpack.c.b16 %v1266, %v1264
    %v1381 = vpack.c.b16 %v1267, %v1265
    %v1382 = vpack.c.b16 %v1270, %v1268
    %v1383 = vpack.c.b16 %v1271, %v1269
    %v1384 = vpack.c.b16 %v1274, %v1272
    %v1385 = vpack.c.b16 %v1275, %v1273
    %v1386 = vpack.c.b16 %v1278, %v1276
    %v1387 = vpack.c.b16 %v1279, %v1277
    %v1388 = vpack.c.b16 %v1282, %v1280
    %v1389 = vpack.c.b16 %v1283, %v1281
    %v1390 = vpack.c.b16 %v1286, %v1284
    %v1391 = vpack.c.b16 %v1287, %v1285
    %v1392 = vpack.c.b16 %v1290, %v1288
    %v1393 = vpack.c.b16 %v1291, %v1289
    %v1394 = vpack.c.b16 %v1294, %v1292
    %v1395 = vpack.c.b16 %v1295, %v1293
    %v1396 = vpack.c.b16 %v1298, %v1296
    %v1397 = vpack.c.b16 %v1299, %v1297
    %v1398 = vpack.c.b16 %v1302, %v1300
    %v1399 = vpack.c.b16 %v1303, %v1301
    %v1400 = vpack.c.b16 %v1306, %v1304
    %v1401 = vpack.c.b16 %v1307, %v1305
    %v1402 = vpack.c.b16 %v1310, %v1308
    %v1403 = vpack.c.b16 %v1311, %v1309
    %v1404 = vpack.c.b16 %v1314, %v1312
    %v1405 = vpack.c.b16 %v1315, %v1313
    %v1406 = vpack.c.b16 %v1318, %v1316
    %v1407 = vpack.c.b16 %v1319, %v1317
    %v1408 = vpack.c.b16 %v1322, %v1320
    %v1409 = vpack.c.b16 %v1323, %v1321
    %v1410 = vpack.c.b16 %v1326, %v1324
    %v1411 = vpack.c.b16 %v1327, %v1325
    %v1412 = vpack.c.b16 %v1330, %v1328
    %v1413 = vpack.c.b16 %v1331, %v1329
    %v1414 = vpack.c.b16 %v1334, %v1332
    %v1415 = vpack.c.b16 %v1335, %v1333
    %v1416 = vpack.c.b16 %v1338, %v1336
    %v1417 = vpack.c.b16 %v1339, %v1337
    %v1418 = vpack.c.b16 %v1342, %v1340
    %v1419 = vpack.c.b16 %v1343, %v1341
    %v1420 = vpack.c.b16 %v1346, %v1344
    %v1421 = vpack.c.b16 %v1347, %v1345
    %v1422 = vpack.c.b16 %v1350, %v1348
    %v1423 = vpack.c.b16 %v1351, %v1349
    %v1424 = vpack.c.b16 %v1354, %v1352
    %v1425 = vpack.c.b16 %v1355, %v1353
    %v1426 = vpack.c.b16 %v1358, %v1356
    %v1427 = vpack.c.b16 %v1359, %v1357
    %v1428 = vpack.c.b16 %v1362, %v1360
    %v1429 = vpack.c.b16 %v1363, %v1361
    %v1430 = vpack.c.b16 %v1366, %v1364
    %v1431 = vpack.c.b16 %v1367, %v1365
    %1496 = vmatprep.subr.bf16.mxu0 %v1369
    %1497 = vmatpush1.bf16.msra.mxu0 %v1368
    %1498 = vmatprep.subr.bf16.mxu0 %v1371
    %1499 = vmatpush1.bf16.msra.mxu0 %v1370
    %1500 = vmatprep.subr.bf16.mxu0 %v1373
    %1501 = vmatpush1.bf16.msra.mxu0 %v1372
    %1502 = vmatprep.subr.bf16.mxu0 %v1375
    %1503 = vmatpush1.bf16.msra.mxu0 %v1374
    %1504 = vmatprep.subr.bf16.mxu0 %v1377
    %1505 = vmatpush1.bf16.msra.mxu0 %v1376
    %1506 = vmatprep.subr.bf16.mxu0 %v1379
    %1507 = vmatpush1.bf16.msra.mxu0 %v1378
    %1508 = vmatprep.subr.bf16.mxu0 %v1381
    %1509 = vmatpush1.bf16.msra.mxu0 %v1380
    %1510 = vmatprep.subr.bf16.mxu0 %v1383
    %1511 = vmatpush1.bf16.msra.mxu0 %v1382
    %1512 = vmatprep.subr.bf16.mxu0 %v1385
    %1513 = vmatpush1.bf16.msra.mxu0 %v1384
    %1514 = vmatprep.subr.bf16.mxu0 %v1387
    %1515 = vmatpush1.bf16.msra.mxu0 %v1386
    %1516 = vmatprep.subr.bf16.mxu0 %v1389
    %1517 = vmatpush1.bf16.msra.mxu0 %v1388
    %1518 = vmatprep.subr.bf16.mxu0 %v1391
    %1519 = vmatpush1.bf16.msra.mxu0 %v1390
    %1520 = vmatprep.subr.bf16.mxu0 %v1393
    %1521 = vmatpush1.bf16.msra.mxu0 %v1392
    %1522 = vmatprep.subr.bf16.mxu0 %v1395
    %1523 = vmatpush1.bf16.msra.mxu0 %v1394
    %1524 = vmatprep.subr.bf16.mxu0 %v1397
    %1525 = vmatpush1.bf16.msra.mxu0 %v1396
    %1526 = vmatprep.subr.bf16.mxu0 %v1399
    %1527 = vmatpush1.bf16.msra.mxu0 %v1398
    %1528 = vmatprep.mubr.bf16.mxu0 %v1097
    %1529 = vmatmul.mubr.bf16.gmra.mrb[0].mxu0 %v1096
    %v1530 = vpop.f32.mrb[0].mxu0
    %v1531 = vadd.f32 %v1169, %v1530
    %v1532 = vpop.f32.mrb[0].mxu0
    %v1533 = vadd.f32 %v1173, %v1532
    %v1534 = vpop.f32.mrb[0].mxu0
    %v1535 = vadd.f32 %v1169, %v1534
    %v1536 = vpop.f32.mrb[0].mxu0
    %v1537 = vadd.f32 %v1173, %v1536
    %1538 = vdwg.mxu0
    %1539 = vmatprep.subr.bf16.mxu0 %v1401
    %1540 = vmatpush1.bf16.msra.mxu0 %v1400
    %1541 = vmatprep.subr.bf16.mxu0 %v1403
    %1542 = vmatpush1.bf16.msra.mxu0 %v1402
    %1543 = vmatprep.subr.bf16.mxu0 %v1405
    %1544 = vmatpush1.bf16.msra.mxu0 %v1404
    %1545 = vmatprep.subr.bf16.mxu0 %v1407
    %1546 = vmatpush1.bf16.msra.mxu0 %v1406
    %1547 = vmatprep.subr.bf16.mxu0 %v1409
    %1548 = vmatpush1.bf16.msra.mxu0 %v1408
    %1549 = vmatprep.subr.bf16.mxu0 %v1411
    %1550 = vmatpush1.bf16.msra.mxu0 %v1410
    %1551 = vmatprep.subr.bf16.mxu0 %v1413
    %1552 = vmatpush1.bf16.msra.mxu0 %v1412
    %1553 = vmatprep.subr.bf16.mxu0 %v1415
    %1554 = vmatpush1.bf16.msra.mxu0 %v1414
    %1555 = vmatprep.subr.bf16.mxu0 %v1417
    %1556 = vmatpush1.bf16.msra.mxu0 %v1416
    %1557 = vmatprep.subr.bf16.mxu0 %v1419
    %1558 = vmatpush1.bf16.msra.mxu0 %v1418
    %1559 = vmatprep.subr.bf16.mxu0 %v1421
    %1560 = vmatpush1.bf16.msra.mxu0 %v1420
    %1561 = vmatprep.subr.bf16.mxu0 %v1423
    %1562 = vmatpush1.bf16.msra.mxu0 %v1422
    %1563 = vmatprep.subr.bf16.mxu0 %v1425
    %1564 = vmatpush1.bf16.msra.mxu0 %v1424
    %1565 = vmatprep.subr.bf16.mxu0 %v1427
    %1566 = vmatpush1.bf16.msra.mxu0 %v1426
    %1567 = vmatprep.subr.bf16.mxu0 %v1429
    %1568 = vmatpush1.bf16.msra.mxu0 %v1428
    %1569 = vmatprep.subr.bf16.mxu0 %v1431
    %1570 = vmatpush1.bf16.msra.mxu0 %v1430
    %1571 = vmatprep.mubr.bf16.mxu0 %v1099
    %1572 = vmatmul.mubr.bf16.gmra.mrb[0].mxu0 %v1098
    %v1573 = vpop.f32.mrb[0].mxu0
    %v1574 = vadd.f32 %v1531, %v1573
    %v1575 = vpop.f32.mrb[0].mxu0
    %v1576 = vadd.f32 %v1533, %v1575
    %v1577 = vpop.f32.mrb[0].mxu0
    %v1578 = vadd.f32 %v1535, %v1577
    %v1579 = vpop.f32.mrb[0].mxu0
    %v1580 = vadd.f32 %v1537, %v1579
    %1581 = vdwg.mxu0
    %v1582 = vmax.f32 %v1574, 0.0
    %v1583 = vmax.f32 %v1576, 0.0
    %v1584 = vmax.f32 %v1578, 0.0
    %v1585 = vmax.f32 %v1580, 0.0
    %v1586 = vpack.c.bf16 %v1584, %v1582
    %v1587 = vpack.c.bf16 %v1585, %v1583
    %v1588 = vld [vmem:[#allocation8] sm:$0xf]
    %v1589 = vld [vmem:[#allocation8 + $0x4] sm:$0xf]
    %v1590 = vld [vmem:[#allocation8 + $0x8] sm:$0xf]
    %v1591 = vld [vmem:[#allocation8 + $0xc] sm:$0xf]
    %v1592 = vld [vmem:[#allocation8 + $0x10] sm:$0xf]
    %v1593 = vld [vmem:[#allocation8 + $0x14] sm:$0xf]
    %v1594 = vld [vmem:[#allocation8 + $0x18] sm:$0xf]
    %v1595 = vld [vmem:[#allocation8 + $0x1c] sm:$0xf]
    %v1596 = vld [vmem:[#allocation8 + $0x20] sm:$0xf]
    %v1597 = vld [vmem:[#allocation8 + $0x24] sm:$0xf]
    %v1598 = vld [vmem:[#allocation8 + $0x28] sm:$0xf]
    %v1599 = vld [vmem:[#allocation8 + $0x2c] sm:$0xf]
    %v1600 = vld [vmem:[#allocation8 + $0x30] sm:$0xf]
    %v1601 = vld [vmem:[#allocation8 + $0x34] sm:$0xf]
    %v1602 = vld [vmem:[#allocation8 + $0x38] sm:$0xf]
    %v1603 = vld [vmem:[#allocation8 + $0x3c] sm:$0xf]
    %v1604 = vld [vmem:[#allocation8 + $0x40] sm:$0xf]
    %v1605 = vld [vmem:[#allocation8 + $0x44] sm:$0xf]
    %v1606 = vld [vmem:[#allocation8 + $0x48] sm:$0xf]
    %v1607 = vld [vmem:[#allocation8 + $0x4c] sm:$0xf]
    %v1608 = vld [vmem:[#allocation8 + $0x50] sm:$0xf]
    %v1609 = vld [vmem:[#allocation8 + $0x54] sm:$0xf]
    %v1610 = vld [vmem:[#allocation8 + $0x58] sm:$0xf]
    %v1611 = vld [vmem:[#allocation8 + $0x5c] sm:$0xf]
    %v1612 = vld [vmem:[#allocation8 + $0x60] sm:$0xf]
    %v1613 = vld [vmem:[#allocation8 + $0x64] sm:$0xf]
    %v1614 = vld [vmem:[#allocation8 + $0x68] sm:$0xf]
    %v1615 = vld [vmem:[#allocation8 + $0x6c] sm:$0xf]
    %v1616 = vld [vmem:[#allocation8 + $0x70] sm:$0xf]
    %v1617 = vld [vmem:[#allocation8 + $0x74] sm:$0xf]
    %v1618 = vld [vmem:[#allocation8 + $0x78] sm:$0xf]
    %v1619 = vld [vmem:[#allocation8 + $0x7c] sm:$0xf]
    %v1620 = vld [vmem:[%s6] sm:$0x1]
    %v1622 = vlaneseq
    %v1623 = vshrl.u32 %v1622, 7
    %v1624 = vsub.s32 0, %v1623
    %v1625 = vrot.slane %v1620, %v1624
    %v1659 = vunpack.c.l.b16 %v1588
    %v1660 = vunpack.c.l.b16 %v1589
    %v1661 = vunpack.c.l.b16 %v1590
    %v1662 = vunpack.c.l.b16 %v1591
    %v1663 = vunpack.c.l.b16 %v1592
    %v1664 = vunpack.c.l.b16 %v1593
    %v1665 = vunpack.c.l.b16 %v1594
    %v1666 = vunpack.c.l.b16 %v1595
    %v1667 = vunpack.c.l.b16 %v1596
    %v1668 = vunpack.c.l.b16 %v1597
    %v1669 = vunpack.c.l.b16 %v1598
    %v1670 = vunpack.c.l.b16 %v1599
    %v1671 = vunpack.c.l.b16 %v1600
    %v1672 = vunpack.c.l.b16 %v1601
    %v1673 = vunpack.c.l.b16 %v1602
    %v1674 = vunpack.c.l.b16 %v1603
    %v1675 = vunpack.c.l.b16 %v1604
    %v1676 = vunpack.c.l.b16 %v1605
    %v1677 = vunpack.c.l.b16 %v1606
    %v1678 = vunpack.c.l.b16 %v1607
    %v1679 = vunpack.c.l.b16 %v1608
    %v1680 = vunpack.c.l.b16 %v1609
    %v1681 = vunpack.c.l.b16 %v1610
    %v1682 = vunpack.c.l.b16 %v1611
    %v1683 = vunpack.c.l.b16 %v1612
    %v1684 = vunpack.c.l.b16 %v1613
    %v1685 = vunpack.c.l.b16 %v1614
    %v1686 = vunpack.c.l.b16 %v1615
    %v1687 = vunpack.c.l.b16 %v1616
    %v1688 = vunpack.c.l.b16 %v1617
    %v1689 = vunpack.c.l.b16 %v1618
    %v1690 = vunpack.c.l.b16 %v1619
    %v1691 = vpack.c.b16 %v1660, %v1659
    %v1692 = vpack.c.b16 %v1662, %v1661
    %v1693 = vpack.c.b16 %v1664, %v1663
    %v1694 = vpack.c.b16 %v1666, %v1665
    %v1695 = vpack.c.b16 %v1668, %v1667
    %v1696 = vpack.c.b16 %v1670, %v1669
    %v1697 = vpack.c.b16 %v1672, %v1671
    %v1698 = vpack.c.b16 %v1674, %v1673
    %v1699 = vpack.c.b16 %v1676, %v1675
    %v1700 = vpack.c.b16 %v1678, %v1677
    %v1701 = vpack.c.b16 %v1680, %v1679
    %v1702 = vpack.c.b16 %v1682, %v1681
    %v1703 = vpack.c.b16 %v1684, %v1683
    %v1704 = vpack.c.b16 %v1686, %v1685
    %v1705 = vpack.c.b16 %v1688, %v1687
    %v1706 = vpack.c.b16 %v1690, %v1689
    %1723 = vmatprep.subr.bf16.mxu0 0
    %1724 = vmatpush1.bf16.msra.mxu0 %v1691
    %1725 = vmatprep.subr.bf16.mxu0 0
    %1726 = vmatpush1.bf16.msra.mxu0 %v1692
    %1727 = vmatprep.subr.bf16.mxu0 0
    %1728 = vmatpush1.bf16.msra.mxu0 %v1693
    %1729 = vmatprep.subr.bf16.mxu0 0
    %1730 = vmatpush1.bf16.msra.mxu0 %v1694
    %1731 = vmatprep.subr.bf16.mxu0 0
    %1732 = vmatpush1.bf16.msra.mxu0 %v1695
    %1733 = vmatprep.subr.bf16.mxu0 0
    %1734 = vmatpush1.bf16.msra.mxu0 %v1696
    %1735 = vmatprep.subr.bf16.mxu0 0
    %1736 = vmatpush1.bf16.msra.mxu0 %v1697
    %1737 = vmatprep.subr.bf16.mxu0 0
    %1738 = vmatpush1.bf16.msra.mxu0 %v1698
    %1739 = vmatprep.subr.bf16.mxu0 0
    %1740 = vmatpush1.bf16.msra.mxu0 %v1699
    %1741 = vmatprep.subr.bf16.mxu0 0
    %1742 = vmatpush1.bf16.msra.mxu0 %v1700
    %1743 = vmatprep.subr.bf16.mxu0 0
    %1744 = vmatpush1.bf16.msra.mxu0 %v1701
    %1745 = vmatprep.subr.bf16.mxu0 0
    %1746 = vmatpush1.bf16.msra.mxu0 %v1702
    %1747 = vmatprep.subr.bf16.mxu0 0
    %1748 = vmatpush1.bf16.msra.mxu0 %v1703
    %1749 = vmatprep.subr.bf16.mxu0 0
    %1750 = vmatpush1.bf16.msra.mxu0 %v1704
    %1751 = vmatprep.subr.bf16.mxu0 0
    %1752 = vmatpush1.bf16.msra.mxu0 %v1705
    %1753 = vmatprep.subr.bf16.mxu0 0
    %1754 = vmatpush1.bf16.msra.mxu0 %v1706
    %1755 = vmatprep.mubr.bf16.mxu0 %v1587
    %1756 = vmatmul.mubr.bf16.gmra.mrb[0].mxu0 %v1586
    %v1757 = vpop.f32.mrb[0].mxu0
    %v1758 = vadd.f32 %v1625, %v1757
    %v1759 = vpop.f32.mrb[0].mxu0
    %v1760 = vpop.f32.mrb[0].mxu0
    %v1761 = vadd.f32 %v1625, %v1760
    %v1762 = vpop.f32.mrb[0].mxu0
    %1763 = vdwg.mxu0
    %v1764 = vmax.f32 %v1758, 0.0
    %v1765 = vmax.f32 %v1761, 0.0
    %v1766 = vpack.c.bf16 %v1765, %v1764
    %v1767 = vld [vmem:[#allocation10] sm:$0xf]
    %v1768 = vld [vmem:[#allocation10 + $0x4] sm:$0xf]
    %v1769 = vld [vmem:[#allocation10 + $0x8] sm:$0xf]
    %v1770 = vld [vmem:[#allocation10 + $0xc] sm:$0xf]
    %v1771 = vld [vmem:[#allocation10 + $0x10] sm:$0xf]
    %v1772 = vld [vmem:[#allocation10 + $0x14] sm:$0xf]
    %v1773 = vld [vmem:[#allocation10 + $0x18] sm:$0xf]
    %v1774 = vld [vmem:[#allocation10 + $0x1c] sm:$0xf]
    %v1775 = vld [vmem:[#allocation10 + $0x20] sm:$0xf]
    %v1776 = vld [vmem:[#allocation10 + $0x24] sm:$0xf]
    %v1777 = vld [vmem:[#allocation10 + $0x28] sm:$0xf]
    %v1778 = vld [vmem:[#allocation10 + $0x2c] sm:$0xf]
    %v1779 = vld [vmem:[#allocation10 + $0x30] sm:$0xf]
    %v1780 = vld [vmem:[#allocation10 + $0x34] sm:$0xf]
    %v1781 = vld [vmem:[#allocation10 + $0x38] sm:$0xf]
    %v1782 = vld [vmem:[#allocation10 + $0x3c] sm:$0xf]
    %v1783 = vld [vmem:[%s8] sm:$0x1]
    %v1785 = vlaneseq
    %v1786 = vshrl.u32 %v1785, 7
    %v1787 = vsub.s32 0, %v1786
    %v1788 = vrot.slane %v1783, %v1787
    %v1806 = vunpack.c.l.b16 %v1767
    %v1807 = vunpack.c.l.b16 %v1768
    %v1808 = vunpack.c.l.b16 %v1769
    %v1809 = vunpack.c.l.b16 %v1770
    %v1810 = vunpack.c.l.b16 %v1771
    %v1811 = vunpack.c.l.b16 %v1772
    %v1812 = vunpack.c.l.b16 %v1773
    %v1813 = vunpack.c.l.b16 %v1774
    %v1814 = vunpack.c.l.b16 %v1775
    %v1815 = vunpack.c.l.b16 %v1776
    %v1816 = vunpack.c.l.b16 %v1777
    %v1817 = vunpack.c.l.b16 %v1778
    %v1818 = vunpack.c.l.b16 %v1779
    %v1819 = vunpack.c.l.b16 %v1780
    %v1820 = vunpack.c.l.b16 %v1781
    %v1821 = vunpack.c.l.b16 %v1782
    %v1822 = vpack.c.b16 %v1807, %v1806
    %v1823 = vpack.c.b16 %v1809, %v1808
    %v1824 = vpack.c.b16 %v1811, %v1810
    %v1825 = vpack.c.b16 %v1813, %v1812
    %v1826 = vpack.c.b16 %v1815, %v1814
    %v1827 = vpack.c.b16 %v1817, %v1816
    %v1828 = vpack.c.b16 %v1819, %v1818
    %v1829 = vpack.c.b16 %v1821, %v1820
    %1838 = vmatprep.subr.bf16.mxu0 0
    %1839 = vmatpush1.bf16.msra.mxu0 %v1822
    %1840 = vmatprep.subr.bf16.mxu0 0
    %1841 = vmatpush1.bf16.msra.mxu0 %v1823
    %1842 = vmatprep.subr.bf16.mxu0 0
    %1843 = vmatpush1.bf16.msra.mxu0 %v1824
    %1844 = vmatprep.subr.bf16.mxu0 0
    %1845 = vmatpush1.bf16.msra.mxu0 %v1825
    %1846 = vmatprep.subr.bf16.mxu0 0
    %1847 = vmatpush1.bf16.msra.mxu0 %v1826
    %1848 = vmatprep.subr.bf16.mxu0 0
    %1849 = vmatpush1.bf16.msra.mxu0 %v1827
    %1850 = vmatprep.subr.bf16.mxu0 0
    %1851 = vmatpush1.bf16.msra.mxu0 %v1828
    %1852 = vmatprep.subr.bf16.mxu0 0
    %1853 = vmatpush1.bf16.msra.mxu0 %v1829
    %1854 = vmatprep.subr.bf16.mxu0 0
    %1855 = vmatpush1.bf16.msra.mxu0 0
    %1856 = vmatprep.subr.bf16.mxu0 0
    %1857 = vmatpush1.bf16.msra.mxu0 0
    %1858 = vmatprep.subr.bf16.mxu0 0
    %1859 = vmatpush1.bf16.msra.mxu0 0
    %1860 = vmatprep.subr.bf16.mxu0 0
    %1861 = vmatpush1.bf16.msra.mxu0 0
    %1862 = vmatprep.subr.bf16.mxu0 0
    %1863 = vmatpush1.bf16.msra.mxu0 0
    %1864 = vmatprep.subr.bf16.mxu0 0
    %1865 = vmatpush1.bf16.msra.mxu0 0
    %1866 = vmatprep.subr.bf16.mxu0 0
    %1867 = vmatpush1.bf16.msra.mxu0 0
    %1868 = vmatprep.subr.bf16.mxu0 0
    %1869 = vmatpush1.bf16.msra.mxu0 0
    %1870 = vmatprep.mubr.bf16.mxu0 0
    %1871 = vmatmul.mubr.bf16.gmra.mrb[0].mxu0 %v1766
    %v1872 = vpop.f32.mrb[0].mxu0
    %v1873 = vadd.f32 %v1788, %v1872
    %v1874 = vpop.f32.mrb[0].mxu0
    %v1875 = vpop.f32.mrb[0].mxu0
    %v1876 = vadd.f32 %v1788, %v1875
    %v1877 = vpop.f32.mrb[0].mxu0
    %1878 = vdwg.mxu0
    %1879 = vst [vmem:[#allocation11] sm:$0xff] %v1873
    %1880 = vst [vmem:[#allocation11 + $0x8] sm:$0xff] %v1876
    // Predicated region
    $region58: #{tpu_custom_call.1} parent=1 // pred_check
      _
    $region59: #{tpu_custom_call.1} parent=1 // pred_check_branch
      %1882 = sbr.rel (0) target = $region61
    $region60: #{tpu_custom_call.1} parent=1 // pred_region
      %s1884 = ssub.s32 256, 256
      %1885 = vsyncadd [#allocation4], %s1884
      %s1886 = sshll.u32 [#allocation11], 4
      %s1887 = int_to_ptr.vmem [resolvable:$true] %s1886
      %1892 = dma.vmem_to_hbm [thread:$0]  %s1887, 256, %s9, [#allocation4], 128, 128, 8
    $region61: #{tpu_custom_call.1} parent=1 // pred_fallthru
      _
    // Predicated region
    $region62: #{tpu_custom_call.1} parent=1 // pred_check
      _
    $region63: #{tpu_custom_call.1} parent=1 // pred_check_branch
      %1894 = sbr.rel (0) target = $region65
    $region64: #{tpu_custom_call.1} parent=1 // pred_region
      %1895 = dma.done [#allocation4], 256
    $region65: #{tpu_custom_call.1} parent=1 // pred_fallthru
      _
    %1896 = vsyncpa [#allocation3], 1
    %1897 = vsyncpa [#allocation6], 1
    %1898 = vsyncpa [#allocation9], 1
    %1899 = vsyncpa [#allocation4], 1

</llo_original>
